<compile_context>
chip_gen: v7x
topology: tpu7x:2x2x1
jax: 0.10.0
libtpu: 0.0.40
codegen_flags: <defaults>
</compile_context>

<pallas_src>
import functools
import math

import jax
import jax.numpy as jnp
from jax.experimental import pallas as pl
from jax.experimental.pallas import tpu as pltpu


# Row indices inside the stacked (7, E) per-channel vector parameter block.
_BO, _B1, _B2, _G1, _BETA1, _G2, _BETA2 = range(7)


def _erf(x):
    # Abramowitz-Stegun 7.1.26 rational approximation (max abs err ~1.5e-7),
    # built only from ops Mosaic supports (exp, mul, add, select).
    p = 0.3275911
    a1, a2, a3, a4, a5 = (0.254829592, -0.284496736, 1.421413741,
                          -1.453152027, 1.061405429)
    sign = jnp.where(x >= 0.0, 1.0, -1.0)
    ax = jnp.abs(x)
    t = 1.0 / (1.0 + p * ax)
    poly = ((((a5 * t + a4) * t + a3) * t + a2) * t + a1) * t
    return sign * (1.0 - poly * jnp.exp(-ax * ax))


def _gelu_exact(x):
    # nn.GELU() default = exact (erf-based) GELU.
    return 0.5 * x * (1.0 + _erf(x * (1.0 / math.sqrt(2.0))))


def _layernorm(x, gamma, beta, eps):
    mean = jnp.mean(x, axis=-1, keepdims=True)
    var = jnp.mean((x - mean) ** 2, axis=-1, keepdims=True)
    inv = jax.lax.rsqrt(var + eps)
    return (x - mean) * inv * gamma + beta


def encoder_layer_kernel(
    src_ref, adjt_ref,
    wqkv_ref, bqkv_ref, wo_ref, w1_ref, w2_ref, vec_ref,
    out_ref, score_ref,
    ctx_scratch, src2_scratch,
    *, nhead, eps, batch_tile, seq_len, use_bf16,
):
    E = wo_ref.shape[0]
    hd = E // nhead
    S = seq_len
    scale = 1.0 / math.sqrt(hd)

    def _mm(a, b, dims=None):
        # All matmuls accumulate in fp32 on the MXU.  Optional bf16 inputs
        # (opt-in) roughly triple MXU throughput on v6e/v7x.
        if use_bf16:
            a = a.astype(jnp.bfloat16)
            b = b.astype(jnp.bfloat16)
        if dims is None:
            return jnp.dot(a, b, preferred_element_type=jnp.float32)
        return jax.lax.dot_general(a, b, dims,
                                   preferred_element_type=jnp.float32)

    bo = vec_ref[_BO:_BO + 1, :]
    b1 = vec_ref[_B1:_B1 + 1, :]
    b2 = vec_ref[_B2:_B2 + 1, :]
    g1 = vec_ref[_G1:_G1 + 1, :]
    beta1 = vec_ref[_BETA1:_BETA1 + 1, :]
    g2 = vec_ref[_G2:_G2 + 1, :]
    beta2 = vec_ref[_BETA2:_BETA2 + 1, :]

    # ---- one fused QKV projection for the whole (batch_tile*S, E) slab ----
    x_all = src_ref[...]                                    # (bt*S, E)
    qkv = _mm(x_all, wqkv_ref[...]) + bqkv_ref[...]         # (bt*S, 3E)
    q_all = qkv[:, :E] * scale                              # q-scale after bias (PyTorch)
    k_all = qkv[:, E:2 * E]
    v_all = qkv[:, 2 * E:]

    # ---- per-(batch, head) scaled dot-product attention ----
    for bi in range(batch_tile):
        rows = slice(bi * S, (bi + 1) * S)
        q, k, v = q_all[rows], k_all[rows], v_all[rows]
        score_sum = jnp.zeros((S, S), jnp.float32)
        for h in range(nhead):
            cols = slice(h * hd, (h + 1) * hd)
            s = _mm(q[:, cols], k[:, cols], (((1,), (1,)), ((), ())))  # q @ k.T
            s = s - jnp.max(s, axis=-1, keepdims=True)
            p = jnp.exp(s)
            p = p * pl.reciprocal(jnp.sum(p, axis=-1, keepdims=True),
                                  approx=True)
            score_sum = score_sum + p
            ctx_scratch[rows, cols] = _mm(p, v[:, cols])    # (S, hd) ctx slice
        score_ref[bi] = score_sum * (1.0 / nhead)           # head-averaged weights

    # ---- single full-depth (K=E) output projection over the whole slab ----
    attn_out = _mm(ctx_scratch[...], wo_ref[...]) + bo      # (bt*S, E)

    # ---- src2 = adjacency^T @ attn_out (adjacency pre-transposed in wrapper) ----
    for bi in range(batch_tile):
        rows = slice(bi * S, (bi + 1) * S)
        src2_scratch[rows, :] = _mm(adjt_ref[bi], attn_out[rows])

    # ---- residual + LN1, FFN (E -> E -> E), residual + LN2, on the slab ----
    x1 = _layernorm(x_all + src2_scratch[...], g1, beta1, eps)
    h1 = _mm(x1, w1_ref[...]) + b1
    act = _gelu_exact(h1)
    h2 = _mm(act, w2_ref[...]) + b2
    out_ref[...] = _layernorm(x1 + h2, g2, beta2, eps)


def _pick_batch_tile(B, S, E, max_tile=8):
    # Amortize the ~0.35us per-grid-step overhead when per-element blocks are
    # tiny (e.g. S=8, E=32) by processing several batch elements per step.
    per_elem_bytes = (2 * S * E + 2 * S * S) * 4
    budget = 2 * 1024 * 1024
    bt = max(1, min(B, max_tile, budget // max(per_elem_bytes, 1)))
    while bt > 1 and B % bt != 0:
        bt -= 1
    # Flattened (bt*S, E) src/out blocks must obey the 8-sublane tiling rule
    # unless they span the full (B*S) dimension.
    if bt != B and (bt * S) % 8 != 0:
        good = [c for c in range(bt, 0, -1) if B % c == 0 and (c * S) % 8 == 0]
        bt = good[0] if good else B
    return bt


def _vmem_limit_bytes(bt, S, E, nhead):
    f = 4
    io_blocks = 2 * 2 * bt * (S * E + S * S) * f           # double-buffered src/adjT/out/score
    weights = 2 * (6 * E * E + 3 * E + 7 * E) * f           # double-buffered params
    scratch = 2 * bt * S * E * f                            # ctx + src2 scratch
    temps = (10 * bt * S * E + (nhead + 4) * S * S) * f     # live temporaries (rough)
    est = io_blocks + weights + scratch + temps + (1 << 20)
    return int(min(64 * 2 ** 20, max(32 * 2 ** 20, 2 * est)))


def transformer_encoder_layer(src, adjacency, params, *, nhead, eps=1e-5,
                              use_bf16_matmul=False):
    B, S, E = src.shape
    assert adjacency.shape == (B, S, S)
    assert E % nhead == 0
    wqkv, bqkv, wo, w1, w2, vecs = params

    # Pre-transpose adjacency in HBM (cheap XLA op) so the kernel contracts its
    # lane dim with a plain matmul instead of an in-kernel XLU transpose.
    adj_t = jnp.swapaxes(adjacency, 1, 2)
    # Flatten (B, S, E) -> (B*S, E) (free, row-major) so all dense matmuls /
    # LayerNorms inside the kernel operate on one 2-D slab per grid step.
    src_flat = src.reshape(B * S, E)

    bt = _pick_batch_tile(B, S, E)
    grid = (B // bt,)

    in_specs = [
        pl.BlockSpec((bt * S, E), lambda b: (b, 0)),     # src (flattened)
        pl.BlockSpec((bt, S, S), lambda b: (b, 0, 0)),   # adjacency (transposed)
        pl.BlockSpec(wqkv.shape, lambda b: (0, 0)),      # fused QKV weight (E, 3E)
        pl.BlockSpec(bqkv.shape, lambda b: (0, 0)),      # fused QKV bias   (1, 3E)
        pl.BlockSpec(wo.shape, lambda b: (0, 0)),        # out_proj weight  (E, E)
        pl.BlockSpec(w1.shape, lambda b: (0, 0)),        # linear1 weight   (E, E)
        pl.BlockSpec(w2.shape, lambda b: (0, 0)),        # linear2 weight   (E, E)
        pl.BlockSpec(vecs.shape, lambda b: (0, 0)),      # stacked vectors  (7, E)
    ]
    out_specs = [
        pl.BlockSpec((bt * S, E), lambda b: (b, 0)),     # layer output (flattened)
        pl.BlockSpec((bt, S, S), lambda b: (b, 0, 0)),   # attention score
    ]
    out_shape = [
        jax.ShapeDtypeStruct((B * S, E), jnp.float32),
        jax.ShapeDtypeStruct((B, S, S), jnp.float32),
    ]

    kernel = functools.partial(
        encoder_layer_kernel, nhead=nhead, eps=eps,
        batch_tile=bt, seq_len=S, use_bf16=use_bf16_matmul)

    out_flat, score = pl.pallas_call(
        kernel,
        grid=grid,
        in_specs=in_specs,
        out_specs=out_specs,
        out_shape=out_shape,
        scratch_shapes=[pltpu.VMEM((bt * S, E), jnp.float32),   # per-head ctx assembly
                        pltpu.VMEM((bt * S, E), jnp.float32)],  # src2 assembly
        compiler_params=pltpu.CompilerParams(
            dimension_semantics=("parallel",),
            vmem_limit_bytes=_vmem_limit_bytes(bt, S, E, nhead),
        ),
    )(src_flat, adj_t, wqkv, bqkv, wo, w1, w2, vecs)

    return out_flat.reshape(B, S, E), score


def make_params(key, d_model, nhead):
    E = d_model
    ks = jax.random.split(key, 8)

    # in_proj_weight: (3E, E), xavier_uniform_; in_proj_bias: zeros.
    bound_in = math.sqrt(6.0 / (3 * E + E))
    in_proj_w = jax.random.uniform(ks[0], (3 * E, E), jnp.float32,
                                   -bound_in, bound_in)
    # Fused, transposed QKV weight: columns = [Wq^T | Wk^T | Wv^T].
    wqkv = in_proj_w.T                                   # (E, 3E)
    bqkv = jnp.zeros((1, 3 * E), jnp.float32)

    # out_proj / linear1 / linear2: Linear(E, E), stored transposed (x @ W).
    bound_lin = 1.0 / math.sqrt(E)
    wo = jax.random.uniform(ks[1], (E, E), jnp.float32, -bound_lin, bound_lin).T
    bo = jnp.zeros((E,), jnp.float32)                    # out_proj bias reset to 0
    w1 = jax.random.uniform(ks[2], (E, E), jnp.float32, -bound_lin, bound_lin).T
    b1 = jax.random.uniform(ks[3], (E,), jnp.float32, -bound_lin, bound_lin)
    w2 = jax.random.uniform(ks[4], (E, E), jnp.float32, -bound_lin, bound_lin).T
    b2 = jax.random.uniform(ks[5], (E,), jnp.float32, -bound_lin, bound_lin)

    # LayerNorms.
    g1 = jnp.ones((E,), jnp.float32)
    beta1 = jnp.zeros((E,), jnp.float32)
    g2 = jnp.ones((E,), jnp.float32)
    beta2 = jnp.zeros((E,), jnp.float32)

    # Stack every per-channel vector into a single (7, E) replicated block.
    vecs = jnp.stack([bo, b1, b2, g1, beta1, g2, beta2], axis=0)

    return [wqkv, bqkv, wo, w1, w2, vecs]


def reference_forward(src, adjacency, params, *, nhead, eps=1e-5):
    # Pure-JAX reference of the PyTorch module's forward (dropout p=0).
    wqkv, bqkv, wo, w1, w2, vecs = params
    bo, b1, b2, g1, beta1, g2, beta2 = (vecs[i] for i in range(7))
    B, S, E = src.shape
    hd = E // nhead

    def ln(x, g, b):
        m = jnp.mean(x, axis=-1, keepdims=True)
        v = jnp.mean((x - m) ** 2, axis=-1, keepdims=True)
        return (x - m) * jax.lax.rsqrt(v + eps) * g + b

    qkv = src @ wqkv + bqkv[0]
    q, k, v = qkv[..., :E], qkv[..., E:2 * E], qkv[..., 2 * E:]
    q = q * (1.0 / math.sqrt(hd))
    qh = q.reshape(B, S, nhead, hd).transpose(0, 2, 1, 3)
    kh = k.reshape(B, S, nhead, hd).transpose(0, 2, 1, 3)
    vh = v.reshape(B, S, nhead, hd).transpose(0, 2, 1, 3)
    s = jnp.einsum('bhqd,bhkd->bhqk', qh, kh)
    p = jax.nn.softmax(s, axis=-1)
    score = jnp.mean(p, axis=1)
    ctx = jnp.einsum('bhqk,bhkd->bhqd', p, vh).transpose(0, 2, 1, 3).reshape(B, S, E)
    attn = ctx @ wo + bo
    src2 = jnp.einsum('bts,bte->bse', adjacency, attn)
    x = ln(src + src2, g1, beta1)
    h = x @ w1 + b1
    h = jax.nn.gelu(h, approximate=False)
    h = h @ w2 + b2
    return ln(x + h, g2, beta2), score


if __name__ == "__main__":
    B, S, d_model, nhead = 2, 8, 32, 4

    key = jax.random.PRNGKey(0)
    k_src, k_adj, k_par = jax.random.split(key, 3)

    src = jax.random.normal(k_src, (B, S, d_model), jnp.float32)
    adjacency = jax.random.uniform(k_adj, (B, S, S), jnp.float32)

    params = make_params(k_par, d_model, nhead)

    out, score = transformer_encoder_layer(src, adjacency, params,
                                           nhead=nhead, eps=1e-5)
    jax.block_until_ready((out, score))
    assert out.shape == (B, S, d_model) and score.shape == (B, S, S)

    ref_out, ref_score = reference_forward(src, adjacency, params,
                                           nhead=nhead, eps=1e-5)
    assert jnp.allclose(out, ref_out, atol=3e-2, rtol=3e-2), \
        float(jnp.max(jnp.abs(out - ref_out)))
    assert jnp.allclose(score, ref_score, atol=3e-2, rtol=3e-2), \
        float(jnp.max(jnp.abs(score - ref_score)))
    print("KERNEL_OK")
</pallas_src>

<mosaic_0001>
module attributes {stable_mosaic.version = 11 : i64} {
  func.func @encoder_layer_kernel(%arg0: i32, %arg1: memref<16x32xf32, #tpu.memory_space<vmem>>, %arg2: memref<2x8x8xf32, #tpu.memory_space<vmem>>, %arg3: memref<32x96xf32, #tpu.memory_space<vmem>>, %arg4: memref<1x96xf32, #tpu.memory_space<vmem>>, %arg5: memref<32x32xf32, #tpu.memory_space<vmem>>, %arg6: memref<32x32xf32, #tpu.memory_space<vmem>>, %arg7: memref<32x32xf32, #tpu.memory_space<vmem>>, %arg8: memref<7x32xf32, #tpu.memory_space<vmem>>, %arg9: memref<16x32xf32, #tpu.memory_space<vmem>>, %arg10: memref<2x8x8xf32, #tpu.memory_space<vmem>>, %arg11: memref<16x32xf32, #tpu.memory_space<vmem>>, %arg12: memref<16x32xf32, #tpu.memory_space<vmem>>) attributes {dimension_semantics = [#tpu.dimension_semantics<parallel>], iteration_bounds = array<i64: 1>, scalar_prefetch = 0 : i64, scratch_operands = 2 : i64, tpu.core_type = #tpu.core_type<tc>, window_params = [{transform_indices = @transform_0, window_bounds = array<i64: 16, 32>}, {transform_indices = @transform_1, window_bounds = array<i64: 2, 8, 8>}, {pipeline_mode = #tpu.pipeline_mode<synchronous>, transform_indices = @transform_2, window_bounds = array<i64: 32, 96>}, {pipeline_mode = #tpu.pipeline_mode<synchronous>, transform_indices = @transform_3, window_bounds = array<i64: 1, 96>}, {pipeline_mode = #tpu.pipeline_mode<synchronous>, transform_indices = @transform_4, window_bounds = array<i64: 32, 32>}, {pipeline_mode = #tpu.pipeline_mode<synchronous>, transform_indices = @transform_5, window_bounds = array<i64: 32, 32>}, {pipeline_mode = #tpu.pipeline_mode<synchronous>, transform_indices = @transform_6, window_bounds = array<i64: 32, 32>}, {pipeline_mode = #tpu.pipeline_mode<synchronous>, transform_indices = @transform_7, window_bounds = array<i64: 7, 32>}, {transform_indices = @transform_8, window_bounds = array<i64: 16, 32>}, {transform_indices = @transform_9, window_bounds = array<i64: 2, 8, 8>}]} {
    %c0 = arith.constant 0 : index
    %c0_0 = arith.constant 0 : index
    %0 = vector.load %arg8[%c0, %c0_0] : memref<7x32xf32, #tpu.memory_space<vmem>>, vector<1x32xf32>
    %c1 = arith.constant 1 : index
    %c0_1 = arith.constant 0 : index
    %1 = vector.load %arg8[%c1, %c0_1] : memref<7x32xf32, #tpu.memory_space<vmem>>, vector<1x32xf32>
    %c2 = arith.constant 2 : index
    %c0_2 = arith.constant 0 : index
    %2 = vector.load %arg8[%c2, %c0_2] : memref<7x32xf32, #tpu.memory_space<vmem>>, vector<1x32xf32>
    %c3 = arith.constant 3 : index
    %c0_3 = arith.constant 0 : index
    %3 = vector.load %arg8[%c3, %c0_3] : memref<7x32xf32, #tpu.memory_space<vmem>>, vector<1x32xf32>
    %c4 = arith.constant 4 : index
    %c0_4 = arith.constant 0 : index
    %4 = vector.load %arg8[%c4, %c0_4] : memref<7x32xf32, #tpu.memory_space<vmem>>, vector<1x32xf32>
    %c5 = arith.constant 5 : index
    %c0_5 = arith.constant 0 : index
    %5 = vector.load %arg8[%c5, %c0_5] : memref<7x32xf32, #tpu.memory_space<vmem>>, vector<1x32xf32>
    %c6 = arith.constant 6 : index
    %c0_6 = arith.constant 0 : index
    %6 = vector.load %arg8[%c6, %c0_6] : memref<7x32xf32, #tpu.memory_space<vmem>>, vector<1x32xf32>
    %c0_7 = arith.constant 0 : index
    %c0_8 = arith.constant 0 : index
    %7 = vector.load %arg1[%c0_7, %c0_8] : memref<16x32xf32, #tpu.memory_space<vmem>>, vector<16x32xf32>
    %c0_9 = arith.constant 0 : index
    %c0_10 = arith.constant 0 : index
    %8 = vector.load %arg3[%c0_9, %c0_10] : memref<32x96xf32, #tpu.memory_space<vmem>>, vector<32x96xf32>
    %cst = arith.constant dense<0.000000e+00> : vector<16x96xf32>
    %9 = tpu.matmul %7, %8, %cst {dimension_numbers = #tpu.dot_dimension_numbers<[1], [0], [0], [1], [0, 0, 1, 1], [], []>} : vector<16x32xf32>, vector<32x96xf32>, vector<16x96xf32> -> vector<16x96xf32>
    %c0_11 = arith.constant 0 : index
    %c0_12 = arith.constant 0 : index
    %10 = vector.load %arg4[%c0_11, %c0_12] : memref<1x96xf32, #tpu.memory_space<vmem>>, vector<1x96xf32>
    %11 = vector.broadcast %10 : vector<1x96xf32> to vector<16x96xf32>
    %12 = arith.addf %9, %11 : vector<16x96xf32>
    %13 = vector.extract_strided_slice %12 {offsets = [0, 0], sizes = [16, 32], strides = [1, 1]} : vector<16x96xf32> to vector<16x32xf32>
    %cst_13 = arith.constant 0.353553385 : f32
    %14 = vector.broadcast %cst_13 : f32 to vector<16x32xf32>
    %15 = arith.mulf %13, %14 : vector<16x32xf32>
    %16 = vector.extract_strided_slice %12 {offsets = [0, 32], sizes = [16, 32], strides = [1, 1]} : vector<16x96xf32> to vector<16x32xf32>
    %17 = vector.extract_strided_slice %12 {offsets = [0, 64], sizes = [16, 32], strides = [1, 1]} : vector<16x96xf32> to vector<16x32xf32>
    %18 = vector.extract_strided_slice %15 {offsets = [0, 0], sizes = [8, 32], strides = [1, 1]} : vector<16x32xf32> to vector<8x32xf32>
    %19 = vector.extract_strided_slice %16 {offsets = [0, 0], sizes = [8, 32], strides = [1, 1]} : vector<16x32xf32> to vector<8x32xf32>
    %20 = vector.extract_strided_slice %17 {offsets = [0, 0], sizes = [8, 32], strides = [1, 1]} : vector<16x32xf32> to vector<8x32xf32>
    %cst_14 = arith.constant 0.000000e+00 : f32
    %21 = vector.broadcast %cst_14 : f32 to vector<8x8xf32>
    %22 = vector.extract_strided_slice %18 {offsets = [0, 0], sizes = [8, 8], strides = [1, 1]} : vector<8x32xf32> to vector<8x8xf32>
    %23 = vector.extract_strided_slice %19 {offsets = [0, 0], sizes = [8, 8], strides = [1, 1]} : vector<8x32xf32> to vector<8x8xf32>
    %cst_15 = arith.constant dense<0.000000e+00> : vector<8x8xf32>
    %24 = tpu.matmul %22, %23, %cst_15 {dimension_numbers = #tpu.dot_dimension_numbers<[1], [1], [0], [0], [0, 0, 1, 0], [], []>} : vector<8x8xf32>, vector<8x8xf32>, vector<8x8xf32> -> vector<8x8xf32>
    %cst_16 = arith.constant dense<0xFF800000> : vector<8xf32>
    %25 = vector.multi_reduction <maximumf>, %24, %cst_16 [1] : vector<8x8xf32> to vector<8xf32>
    %26 = vector.shape_cast %25 : vector<8xf32> to vector<8x1xf32>
    %27 = vector.broadcast %26 : vector<8x1xf32> to vector<8x8xf32>
    %28 = arith.subf %24, %27 : vector<8x8xf32>
    %29 = math.exp %28 : vector<8x8xf32>
    %cst_17 = arith.constant dense<0.000000e+00> : vector<8xf32>
    %30 = vector.multi_reduction <add>, %29, %cst_17 [1] : vector<8x8xf32> to vector<8xf32>
    %31 = vector.shape_cast %30 : vector<8xf32> to vector<8x1xf32>
    %32 = tpu.reciprocal %31 {approx = true} : vector<8x1xf32> -> vector<8x1xf32>
    %33 = vector.broadcast %32 : vector<8x1xf32> to vector<8x8xf32>
    %34 = arith.mulf %29, %33 : vector<8x8xf32>
    %35 = arith.addf %21, %34 : vector<8x8xf32>
    %36 = vector.extract_strided_slice %20 {offsets = [0, 0], sizes = [8, 8], strides = [1, 1]} : vector<8x32xf32> to vector<8x8xf32>
    %cst_18 = arith.constant dense<0.000000e+00> : vector<8x8xf32>
    %37 = tpu.matmul %34, %36, %cst_18 {dimension_numbers = #tpu.dot_dimension_numbers<[1], [0], [0], [1], [0, 0, 1, 1], [], []>} : vector<8x8xf32>, vector<8x8xf32>, vector<8x8xf32> -> vector<8x8xf32>
    %c0_19 = arith.constant 0 : index
    %c0_20 = arith.constant 0 : index
    %38 = vector.load %arg11[%c0_19, %c0_20] : memref<16x32xf32, #tpu.memory_space<vmem>>, vector<8x8xf32>
    tpu.vector_store %arg11[%c0_19, %c0_20], %37 {strides = array<i32>} : memref<16x32xf32, #tpu.memory_space<vmem>>, vector<8x8xf32>,
    %39 = vector.extract_strided_slice %18 {offsets = [0, 8], sizes = [8, 8], strides = [1, 1]} : vector<8x32xf32> to vector<8x8xf32>
    %40 = vector.extract_strided_slice %19 {offsets = [0, 8], sizes = [8, 8], strides = [1, 1]} : vector<8x32xf32> to vector<8x8xf32>
    %cst_21 = arith.constant dense<0.000000e+00> : vector<8x8xf32>
    %41 = tpu.matmul %39, %40, %cst_21 {dimension_numbers = #tpu.dot_dimension_numbers<[1], [1], [0], [0], [0, 0, 1, 0], [], []>} : vector<8x8xf32>, vector<8x8xf32>, vector<8x8xf32> -> vector<8x8xf32>
    %cst_22 = arith.constant dense<0xFF800000> : vector<8xf32>
    %42 = vector.multi_reduction <maximumf>, %41, %cst_22 [1] : vector<8x8xf32> to vector<8xf32>
    %43 = vector.shape_cast %42 : vector<8xf32> to vector<8x1xf32>
    %44 = vector.broadcast %43 : vector<8x1xf32> to vector<8x8xf32>
    %45 = arith.subf %41, %44 : vector<8x8xf32>
    %46 = math.exp %45 : vector<8x8xf32>
    %cst_23 = arith.constant dense<0.000000e+00> : vector<8xf32>
    %47 = vector.multi_reduction <add>, %46, %cst_23 [1] : vector<8x8xf32> to vector<8xf32>
    %48 = vector.shape_cast %47 : vector<8xf32> to vector<8x1xf32>
    %49 = tpu.reciprocal %48 {approx = true} : vector<8x1xf32> -> vector<8x1xf32>
    %50 = vector.broadcast %49 : vector<8x1xf32> to vector<8x8xf32>
    %51 = arith.mulf %46, %50 : vector<8x8xf32>
    %52 = arith.addf %35, %51 : vector<8x8xf32>
    %53 = vector.extract_strided_slice %20 {offsets = [0, 8], sizes = [8, 8], strides = [1, 1]} : vector<8x32xf32> to vector<8x8xf32>
    %cst_24 = arith.constant dense<0.000000e+00> : vector<8x8xf32>
    %54 = tpu.matmul %51, %53, %cst_24 {dimension_numbers = #tpu.dot_dimension_numbers<[1], [0], [0], [1], [0, 0, 1, 1], [], []>} : vector<8x8xf32>, vector<8x8xf32>, vector<8x8xf32> -> vector<8x8xf32>
    %c0_25 = arith.constant 0 : index
    %c8 = arith.constant 8 : index
    %55 = vector.load %arg11[%c0_25, %c8] : memref<16x32xf32, #tpu.memory_space<vmem>>, vector<8x8xf32>
    tpu.vector_store %arg11[%c0_25, %c8], %54 {strides = array<i32>} : memref<16x32xf32, #tpu.memory_space<vmem>>, vector<8x8xf32>,
    %56 = vector.extract_strided_slice %18 {offsets = [0, 16], sizes = [8, 8], strides = [1, 1]} : vector<8x32xf32> to vector<8x8xf32>
    %57 = vector.extract_strided_slice %19 {offsets = [0, 16], sizes = [8, 8], strides = [1, 1]} : vector<8x32xf32> to vector<8x8xf32>
    %cst_26 = arith.constant dense<0.000000e+00> : vector<8x8xf32>
    %58 = tpu.matmul %56, %57, %cst_26 {dimension_numbers = #tpu.dot_dimension_numbers<[1], [1], [0], [0], [0, 0, 1, 0], [], []>} : vector<8x8xf32>, vector<8x8xf32>, vector<8x8xf32> -> vector<8x8xf32>
    %cst_27 = arith.constant dense<0xFF800000> : vector<8xf32>
    %59 = vector.multi_reduction <maximumf>, %58, %cst_27 [1] : vector<8x8xf32> to vector<8xf32>
    %60 = vector.shape_cast %59 : vector<8xf32> to vector<8x1xf32>
    %61 = vector.broadcast %60 : vector<8x1xf32> to vector<8x8xf32>
    %62 = arith.subf %58, %61 : vector<8x8xf32>
    %63 = math.exp %62 : vector<8x8xf32>
    %cst_28 = arith.constant dense<0.000000e+00> : vector<8xf32>
    %64 = vector.multi_reduction <add>, %63, %cst_28 [1] : vector<8x8xf32> to vector<8xf32>
    %65 = vector.shape_cast %64 : vector<8xf32> to vector<8x1xf32>
    %66 = tpu.reciprocal %65 {approx = true} : vector<8x1xf32> -> vector<8x1xf32>
    %67 = vector.broadcast %66 : vector<8x1xf32> to vector<8x8xf32>
    %68 = arith.mulf %63, %67 : vector<8x8xf32>
    %69 = arith.addf %52, %68 : vector<8x8xf32>
    %70 = vector.extract_strided_slice %20 {offsets = [0, 16], sizes = [8, 8], strides = [1, 1]} : vector<8x32xf32> to vector<8x8xf32>
    %cst_29 = arith.constant dense<0.000000e+00> : vector<8x8xf32>
    %71 = tpu.matmul %68, %70, %cst_29 {dimension_numbers = #tpu.dot_dimension_numbers<[1], [0], [0], [1], [0, 0, 1, 1], [], []>} : vector<8x8xf32>, vector<8x8xf32>, vector<8x8xf32> -> vector<8x8xf32>
    %c0_30 = arith.constant 0 : index
    %c16 = arith.constant 16 : index
    %72 = vector.load %arg11[%c0_30, %c16] : memref<16x32xf32, #tpu.memory_space<vmem>>, vector<8x8xf32>
    tpu.vector_store %arg11[%c0_30, %c16], %71 {strides = array<i32>} : memref<16x32xf32, #tpu.memory_space<vmem>>, vector<8x8xf32>,
    %73 = vector.extract_strided_slice %18 {offsets = [0, 24], sizes = [8, 8], strides = [1, 1]} : vector<8x32xf32> to vector<8x8xf32>
    %74 = vector.extract_strided_slice %19 {offsets = [0, 24], sizes = [8, 8], strides = [1, 1]} : vector<8x32xf32> to vector<8x8xf32>
    %cst_31 = arith.constant dense<0.000000e+00> : vector<8x8xf32>
    %75 = tpu.matmul %73, %74, %cst_31 {dimension_numbers = #tpu.dot_dimension_numbers<[1], [1], [0], [0], [0, 0, 1, 0], [], []>} : vector<8x8xf32>, vector<8x8xf32>, vector<8x8xf32> -> vector<8x8xf32>
    %cst_32 = arith.constant dense<0xFF800000> : vector<8xf32>
    %76 = vector.multi_reduction <maximumf>, %75, %cst_32 [1] : vector<8x8xf32> to vector<8xf32>
    %77 = vector.shape_cast %76 : vector<8xf32> to vector<8x1xf32>
    %78 = vector.broadcast %77 : vector<8x1xf32> to vector<8x8xf32>
    %79 = arith.subf %75, %78 : vector<8x8xf32>
    %80 = math.exp %79 : vector<8x8xf32>
    %cst_33 = arith.constant dense<0.000000e+00> : vector<8xf32>
    %81 = vector.multi_reduction <add>, %80, %cst_33 [1] : vector<8x8xf32> to vector<8xf32>
    %82 = vector.shape_cast %81 : vector<8xf32> to vector<8x1xf32>
    %83 = tpu.reciprocal %82 {approx = true} : vector<8x1xf32> -> vector<8x1xf32>
    %84 = vector.broadcast %83 : vector<8x1xf32> to vector<8x8xf32>
    %85 = arith.mulf %80, %84 : vector<8x8xf32>
    %86 = arith.addf %69, %85 : vector<8x8xf32>
    %87 = vector.extract_strided_slice %20 {offsets = [0, 24], sizes = [8, 8], strides = [1, 1]} : vector<8x32xf32> to vector<8x8xf32>
    %cst_34 = arith.constant dense<0.000000e+00> : vector<8x8xf32>
    %88 = tpu.matmul %85, %87, %cst_34 {dimension_numbers = #tpu.dot_dimension_numbers<[1], [0], [0], [1], [0, 0, 1, 1], [], []>} : vector<8x8xf32>, vector<8x8xf32>, vector<8x8xf32> -> vector<8x8xf32>
    %c0_35 = arith.constant 0 : index
    %c24 = arith.constant 24 : index
    %89 = vector.load %arg11[%c0_35, %c24] : memref<16x32xf32, #tpu.memory_space<vmem>>, vector<8x8xf32>
    tpu.vector_store %arg11[%c0_35, %c24], %88 {strides = array<i32>} : memref<16x32xf32, #tpu.memory_space<vmem>>, vector<8x8xf32>,
    %cst_36 = arith.constant 2.500000e-01 : f32
    %90 = vector.broadcast %cst_36 : f32 to vector<8x8xf32>
    %91 = arith.mulf %86, %90 : vector<8x8xf32>
    %c0_37 = arith.constant 0 : index
    %c0_38 = arith.constant 0 : index
    %c0_39 = arith.constant 0 : index
    %92 = vector.load %arg10[%c0_37, %c0_38, %c0_39] : memref<2x8x8xf32, #tpu.memory_space<vmem>>, vector<1x8x8xf32>
    %93 = vector.shape_cast %92 : vector<1x8x8xf32> to vector<8x8xf32>
    %94 = vector.shape_cast %91 : vector<8x8xf32> to vector<1x8x8xf32>
    tpu.vector_store %arg10[%c0_37, %c0_38, %c0_39], %94 {strides = array<i32>} : memref<2x8x8xf32, #tpu.memory_space<vmem>>, vector<1x8x8xf32>,
    %95 = vector.extract_strided_slice %15 {offsets = [8, 0], sizes = [8, 32], strides = [1, 1]} : vector<16x32xf32> to vector<8x32xf32>
    %96 = vector.extract_strided_slice %16 {offsets = [8, 0], sizes = [8, 32], strides = [1, 1]} : vector<16x32xf32> to vector<8x32xf32>
    %97 = vector.extract_strided_slice %17 {offsets = [8, 0], sizes = [8, 32], strides = [1, 1]} : vector<16x32xf32> to vector<8x32xf32>
    %cst_40 = arith.constant 0.000000e+00 : f32
    %98 = vector.broadcast %cst_40 : f32 to vector<8x8xf32>
    %99 = vector.extract_strided_slice %95 {offsets = [0, 0], sizes = [8, 8], strides = [1, 1]} : vector<8x32xf32> to vector<8x8xf32>
    %100 = vector.extract_strided_slice %96 {offsets = [0, 0], sizes = [8, 8], strides = [1, 1]} : vector<8x32xf32> to vector<8x8xf32>
    %cst_41 = arith.constant dense<0.000000e+00> : vector<8x8xf32>
    %101 = tpu.matmul %99, %100, %cst_41 {dimension_numbers = #tpu.dot_dimension_numbers<[1], [1], [0], [0], [0, 0, 1, 0], [], []>} : vector<8x8xf32>, vector<8x8xf32>, vector<8x8xf32> -> vector<8x8xf32>
    %cst_42 = arith.constant dense<0xFF800000> : vector<8xf32>
    %102 = vector.multi_reduction <maximumf>, %101, %cst_42 [1] : vector<8x8xf32> to vector<8xf32>
    %103 = vector.shape_cast %102 : vector<8xf32> to vector<8x1xf32>
    %104 = vector.broadcast %103 : vector<8x1xf32> to vector<8x8xf32>
    %105 = arith.subf %101, %104 : vector<8x8xf32>
    %106 = math.exp %105 : vector<8x8xf32>
    %cst_43 = arith.constant dense<0.000000e+00> : vector<8xf32>
    %107 = vector.multi_reduction <add>, %106, %cst_43 [1] : vector<8x8xf32> to vector<8xf32>
    %108 = vector.shape_cast %107 : vector<8xf32> to vector<8x1xf32>
    %109 = tpu.reciprocal %108 {approx = true} : vector<8x1xf32> -> vector<8x1xf32>
    %110 = vector.broadcast %109 : vector<8x1xf32> to vector<8x8xf32>
    %111 = arith.mulf %106, %110 : vector<8x8xf32>
    %112 = arith.addf %98, %111 : vector<8x8xf32>
    %113 = vector.extract_strided_slice %97 {offsets = [0, 0], sizes = [8, 8], strides = [1, 1]} : vector<8x32xf32> to vector<8x8xf32>
    %cst_44 = arith.constant dense<0.000000e+00> : vector<8x8xf32>
    %114 = tpu.matmul %111, %113, %cst_44 {dimension_numbers = #tpu.dot_dimension_numbers<[1], [0], [0], [1], [0, 0, 1, 1], [], []>} : vector<8x8xf32>, vector<8x8xf32>, vector<8x8xf32> -> vector<8x8xf32>
    %c8_45 = arith.constant 8 : index
    %c0_46 = arith.constant 0 : index
    %115 = vector.load %arg11[%c8_45, %c0_46] : memref<16x32xf32, #tpu.memory_space<vmem>>, vector<8x8xf32>
    tpu.vector_store %arg11[%c8_45, %c0_46], %114 {strides = array<i32>} : memref<16x32xf32, #tpu.memory_space<vmem>>, vector<8x8xf32>,
    %116 = vector.extract_strided_slice %95 {offsets = [0, 8], sizes = [8, 8], strides = [1, 1]} : vector<8x32xf32> to vector<8x8xf32>
    %117 = vector.extract_strided_slice %96 {offsets = [0, 8], sizes = [8, 8], strides = [1, 1]} : vector<8x32xf32> to vector<8x8xf32>
    %cst_47 = arith.constant dense<0.000000e+00> : vector<8x8xf32>
    %118 = tpu.matmul %116, %117, %cst_47 {dimension_numbers = #tpu.dot_dimension_numbers<[1], [1], [0], [0], [0, 0, 1, 0], [], []>} : vector<8x8xf32>, vector<8x8xf32>, vector<8x8xf32> -> vector<8x8xf32>
    %cst_48 = arith.constant dense<0xFF800000> : vector<8xf32>
    %119 = vector.multi_reduction <maximumf>, %118, %cst_48 [1] : vector<8x8xf32> to vector<8xf32>
    %120 = vector.shape_cast %119 : vector<8xf32> to vector<8x1xf32>
    %121 = vector.broadcast %120 : vector<8x1xf32> to vector<8x8xf32>
    %122 = arith.subf %118, %121 : vector<8x8xf32>
    %123 = math.exp %122 : vector<8x8xf32>
    %cst_49 = arith.constant dense<0.000000e+00> : vector<8xf32>
    %124 = vector.multi_reduction <add>, %123, %cst_49 [1] : vector<8x8xf32> to vector<8xf32>
    %125 = vector.shape_cast %124 : vector<8xf32> to vector<8x1xf32>
    %126 = tpu.reciprocal %125 {approx = true} : vector<8x1xf32> -> vector<8x1xf32>
    %127 = vector.broadcast %126 : vector<8x1xf32> to vector<8x8xf32>
    %128 = arith.mulf %123, %127 : vector<8x8xf32>
    %129 = arith.addf %112, %128 : vector<8x8xf32>
    %130 = vector.extract_strided_slice %97 {offsets = [0, 8], sizes = [8, 8], strides = [1, 1]} : vector<8x32xf32> to vector<8x8xf32>
    %cst_50 = arith.constant dense<0.000000e+00> : vector<8x8xf32>
    %131 = tpu.matmul %128, %130, %cst_50 {dimension_numbers = #tpu.dot_dimension_numbers<[1], [0], [0], [1], [0, 0, 1, 1], [], []>} : vector<8x8xf32>, vector<8x8xf32>, vector<8x8xf32> -> vector<8x8xf32>
    %c8_51 = arith.constant 8 : index
    %c8_52 = arith.constant 8 : index
    %132 = vector.load %arg11[%c8_51, %c8_52] : memref<16x32xf32, #tpu.memory_space<vmem>>, vector<8x8xf32>
    tpu.vector_store %arg11[%c8_51, %c8_52], %131 {strides = array<i32>} : memref<16x32xf32, #tpu.memory_space<vmem>>, vector<8x8xf32>,
    %133 = vector.extract_strided_slice %95 {offsets = [0, 16], sizes = [8, 8], strides = [1, 1]} : vector<8x32xf32> to vector<8x8xf32>
    %134 = vector.extract_strided_slice %96 {offsets = [0, 16], sizes = [8, 8], strides = [1, 1]} : vector<8x32xf32> to vector<8x8xf32>
    %cst_53 = arith.constant dense<0.000000e+00> : vector<8x8xf32>
    %135 = tpu.matmul %133, %134, %cst_53 {dimension_numbers = #tpu.dot_dimension_numbers<[1], [1], [0], [0], [0, 0, 1, 0], [], []>} : vector<8x8xf32>, vector<8x8xf32>, vector<8x8xf32> -> vector<8x8xf32>
    %cst_54 = arith.constant dense<0xFF800000> : vector<8xf32>
    %136 = vector.multi_reduction <maximumf>, %135, %cst_54 [1] : vector<8x8xf32> to vector<8xf32>
    %137 = vector.shape_cast %136 : vector<8xf32> to vector<8x1xf32>
    %138 = vector.broadcast %137 : vector<8x1xf32> to vector<8x8xf32>
    %139 = arith.subf %135, %138 : vector<8x8xf32>
    %140 = math.exp %139 : vector<8x8xf32>
    %cst_55 = arith.constant dense<0.000000e+00> : vector<8xf32>
    %141 = vector.multi_reduction <add>, %140, %cst_55 [1] : vector<8x8xf32> to vector<8xf32>
    %142 = vector.shape_cast %141 : vector<8xf32> to vector<8x1xf32>
    %143 = tpu.reciprocal %142 {approx = true} : vector<8x1xf32> -> vector<8x1xf32>
    %144 = vector.broadcast %143 : vector<8x1xf32> to vector<8x8xf32>
    %145 = arith.mulf %140, %144 : vector<8x8xf32>
    %146 = arith.addf %129, %145 : vector<8x8xf32>
    %147 = vector.extract_strided_slice %97 {offsets = [0, 16], sizes = [8, 8], strides = [1, 1]} : vector<8x32xf32> to vector<8x8xf32>
    %cst_56 = arith.constant dense<0.000000e+00> : vector<8x8xf32>
    %148 = tpu.matmul %145, %147, %cst_56 {dimension_numbers = #tpu.dot_dimension_numbers<[1], [0], [0], [1], [0, 0, 1, 1], [], []>} : vector<8x8xf32>, vector<8x8xf32>, vector<8x8xf32> -> vector<8x8xf32>
    %c8_57 = arith.constant 8 : index
    %c16_58 = arith.constant 16 : index
    %149 = vector.load %arg11[%c8_57, %c16_58] : memref<16x32xf32, #tpu.memory_space<vmem>>, vector<8x8xf32>
    tpu.vector_store %arg11[%c8_57, %c16_58], %148 {strides = array<i32>} : memref<16x32xf32, #tpu.memory_space<vmem>>, vector<8x8xf32>,
    %150 = vector.extract_strided_slice %95 {offsets = [0, 24], sizes = [8, 8], strides = [1, 1]} : vector<8x32xf32> to vector<8x8xf32>
    %151 = vector.extract_strided_slice %96 {offsets = [0, 24], sizes = [8, 8], strides = [1, 1]} : vector<8x32xf32> to vector<8x8xf32>
    %cst_59 = arith.constant dense<0.000000e+00> : vector<8x8xf32>
    %152 = tpu.matmul %150, %151, %cst_59 {dimension_numbers = #tpu.dot_dimension_numbers<[1], [1], [0], [0], [0, 0, 1, 0], [], []>} : vector<8x8xf32>, vector<8x8xf32>, vector<8x8xf32> -> vector<8x8xf32>
    %cst_60 = arith.constant dense<0xFF800000> : vector<8xf32>
    %153 = vector.multi_reduction <maximumf>, %152, %cst_60 [1] : vector<8x8xf32> to vector<8xf32>
    %154 = vector.shape_cast %153 : vector<8xf32> to vector<8x1xf32>
    %155 = vector.broadcast %154 : vector<8x1xf32> to vector<8x8xf32>
    %156 = arith.subf %152, %155 : vector<8x8xf32>
    %157 = math.exp %156 : vector<8x8xf32>
    %cst_61 = arith.constant dense<0.000000e+00> : vector<8xf32>
    %158 = vector.multi_reduction <add>, %157, %cst_61 [1] : vector<8x8xf32> to vector<8xf32>
    %159 = vector.shape_cast %158 : vector<8xf32> to vector<8x1xf32>
    %160 = tpu.reciprocal %159 {approx = true} : vector<8x1xf32> -> vector<8x1xf32>
    %161 = vector.broadcast %160 : vector<8x1xf32> to vector<8x8xf32>
    %162 = arith.mulf %157, %161 : vector<8x8xf32>
    %163 = arith.addf %146, %162 : vector<8x8xf32>
    %164 = vector.extract_strided_slice %97 {offsets = [0, 24], sizes = [8, 8], strides = [1, 1]} : vector<8x32xf32> to vector<8x8xf32>
    %cst_62 = arith.constant dense<0.000000e+00> : vector<8x8xf32>
    %165 = tpu.matmul %162, %164, %cst_62 {dimension_numbers = #tpu.dot_dimension_numbers<[1], [0], [0], [1], [0, 0, 1, 1], [], []>} : vector<8x8xf32>, vector<8x8xf32>, vector<8x8xf32> -> vector<8x8xf32>
    %c8_63 = arith.constant 8 : index
    %c24_64 = arith.constant 24 : index
    %166 = vector.load %arg11[%c8_63, %c24_64] : memref<16x32xf32, #tpu.memory_space<vmem>>, vector<8x8xf32>
    tpu.vector_store %arg11[%c8_63, %c24_64], %165 {strides = array<i32>} : memref<16x32xf32, #tpu.memory_space<vmem>>, vector<8x8xf32>,
    %cst_65 = arith.constant 2.500000e-01 : f32
    %167 = vector.broadcast %cst_65 : f32 to vector<8x8xf32>
    %168 = arith.mulf %163, %167 : vector<8x8xf32>
    %c1_66 = arith.constant 1 : index
    %c0_67 = arith.constant 0 : index
    %c0_68 = arith.constant 0 : index
    %169 = vector.load %arg10[%c1_66, %c0_67, %c0_68] : memref<2x8x8xf32, #tpu.memory_space<vmem>>, vector<1x8x8xf32>
    %170 = vector.shape_cast %169 : vector<1x8x8xf32> to vector<8x8xf32>
    %171 = vector.shape_cast %168 : vector<8x8xf32> to vector<1x8x8xf32>
    tpu.vector_store %arg10[%c1_66, %c0_67, %c0_68], %171 {strides = array<i32>} : memref<2x8x8xf32, #tpu.memory_space<vmem>>, vector<1x8x8xf32>,
    %c0_69 = arith.constant 0 : index
    %c0_70 = arith.constant 0 : index
    %172 = vector.load %arg11[%c0_69, %c0_70] : memref<16x32xf32, #tpu.memory_space<vmem>>, vector<16x32xf32>
    %c0_71 = arith.constant 0 : index
    %c0_72 = arith.constant 0 : index
    %173 = vector.load %arg5[%c0_71, %c0_72] : memref<32x32xf32, #tpu.memory_space<vmem>>, vector<32x32xf32>
    %cst_73 = arith.constant dense<0.000000e+00> : vector<16x32xf32>
    %174 = tpu.matmul %172, %173, %cst_73 {dimension_numbers = #tpu.dot_dimension_numbers<[1], [0], [0], [1], [0, 0, 1, 1], [], []>} : vector<16x32xf32>, vector<32x32xf32>, vector<16x32xf32> -> vector<16x32xf32>
    %175 = vector.broadcast %0 : vector<1x32xf32> to vector<16x32xf32>
    %176 = arith.addf %174, %175 : vector<16x32xf32>
    %c0_74 = arith.constant 0 : index
    %c0_75 = arith.constant 0 : index
    %c0_76 = arith.constant 0 : index
    %177 = vector.load %arg2[%c0_74, %c0_75, %c0_76] : memref<2x8x8xf32, #tpu.memory_space<vmem>>, vector<1x8x8xf32>
    %178 = vector.shape_cast %177 : vector<1x8x8xf32> to vector<8x8xf32>
    %179 = vector.extract_strided_slice %176 {offsets = [0, 0], sizes = [8, 32], strides = [1, 1]} : vector<16x32xf32> to vector<8x32xf32>
    %cst_77 = arith.constant dense<0.000000e+00> : vector<8x32xf32>
    %180 = tpu.matmul %178, %179, %cst_77 {dimension_numbers = #tpu.dot_dimension_numbers<[1], [0], [0], [1], [0, 0, 1, 1], [], []>} : vector<8x8xf32>, vector<8x32xf32>, vector<8x32xf32> -> vector<8x32xf32>
    %c0_78 = arith.constant 0 : index
    %c0_79 = arith.constant 0 : index
    %181 = vector.load %arg12[%c0_78, %c0_79] : memref<16x32xf32, #tpu.memory_space<vmem>>, vector<8x32xf32>
    tpu.vector_store %arg12[%c0_78, %c0_79], %180 {strides = array<i32>} : memref<16x32xf32, #tpu.memory_space<vmem>>, vector<8x32xf32>,
    %c1_80 = arith.constant 1 : index
    %c0_81 = arith.constant 0 : index
    %c0_82 = arith.constant 0 : index
    %182 = vector.load %arg2[%c1_80, %c0_81, %c0_82] : memref<2x8x8xf32, #tpu.memory_space<vmem>>, vector<1x8x8xf32>
    %183 = vector.shape_cast %182 : vector<1x8x8xf32> to vector<8x8xf32>
    %184 = vector.extract_strided_slice %176 {offsets = [8, 0], sizes = [8, 32], strides = [1, 1]} : vector<16x32xf32> to vector<8x32xf32>
    %cst_83 = arith.constant dense<0.000000e+00> : vector<8x32xf32>
    %185 = tpu.matmul %183, %184, %cst_83 {dimension_numbers = #tpu.dot_dimension_numbers<[1], [0], [0], [1], [0, 0, 1, 1], [], []>} : vector<8x8xf32>, vector<8x32xf32>, vector<8x32xf32> -> vector<8x32xf32>
    %c8_84 = arith.constant 8 : index
    %c0_85 = arith.constant 0 : index
    %186 = vector.load %arg12[%c8_84, %c0_85] : memref<16x32xf32, #tpu.memory_space<vmem>>, vector<8x32xf32>
    tpu.vector_store %arg12[%c8_84, %c0_85], %185 {strides = array<i32>} : memref<16x32xf32, #tpu.memory_space<vmem>>, vector<8x32xf32>,
    %c0_86 = arith.constant 0 : index
    %c0_87 = arith.constant 0 : index
    %187 = vector.load %arg12[%c0_86, %c0_87] : memref<16x32xf32, #tpu.memory_space<vmem>>, vector<16x32xf32>
    %188 = arith.addf %7, %187 : vector<16x32xf32>
    %cst_88 = arith.constant dense<0.000000e+00> : vector<16xf32>
    %189 = vector.multi_reduction <add>, %188, %cst_88 [1] : vector<16x32xf32> to vector<16xf32>
    %190 = vector.shape_cast %189 : vector<16xf32> to vector<16x1xf32>
    %cst_89 = arith.constant 3.200000e+01 : f32
    %191 = vector.broadcast %cst_89 : f32 to vector<16x1xf32>
    %192 = arith.divf %190, %191 : vector<16x1xf32>
    %193 = vector.broadcast %192 : vector<16x1xf32> to vector<16x32xf32>
    %194 = arith.subf %188, %193 : vector<16x32xf32>
    %195 = arith.mulf %194, %194 : vector<16x32xf32>
    %cst_90 = arith.constant dense<0.000000e+00> : vector<16xf32>
    %196 = vector.multi_reduction <add>, %195, %cst_90 [1] : vector<16x32xf32> to vector<16xf32>
    %197 = vector.shape_cast %196 : vector<16xf32> to vector<16x1xf32>
    %cst_91 = arith.constant 3.200000e+01 : f32
    %198 = vector.broadcast %cst_91 : f32 to vector<16x1xf32>
    %199 = arith.divf %197, %198 : vector<16x1xf32>
    %cst_92 = arith.constant 9.99999974E-6 : f32
    %200 = vector.broadcast %cst_92 : f32 to vector<16x1xf32>
    %201 = arith.addf %199, %200 : vector<16x1xf32>
    %202 = math.rsqrt %201 : vector<16x1xf32>
    %203 = vector.broadcast %192 : vector<16x1xf32> to vector<16x32xf32>
    %204 = arith.subf %188, %203 : vector<16x32xf32>
    %205 = vector.broadcast %202 : vector<16x1xf32> to vector<16x32xf32>
    %206 = arith.mulf %204, %205 : vector<16x32xf32>
    %207 = vector.broadcast %3 : vector<1x32xf32> to vector<16x32xf32>
    %208 = arith.mulf %206, %207 : vector<16x32xf32>
    %209 = vector.broadcast %4 : vector<1x32xf32> to vector<16x32xf32>
    %210 = arith.addf %208, %209 : vector<16x32xf32>
    %c0_93 = arith.constant 0 : index
    %c0_94 = arith.constant 0 : index
    %211 = vector.load %arg6[%c0_93, %c0_94] : memref<32x32xf32, #tpu.memory_space<vmem>>, vector<32x32xf32>
    %cst_95 = arith.constant dense<0.000000e+00> : vector<16x32xf32>
    %212 = tpu.matmul %210, %211, %cst_95 {dimension_numbers = #tpu.dot_dimension_numbers<[1], [0], [0], [1], [0, 0, 1, 1], [], []>} : vector<16x32xf32>, vector<32x32xf32>, vector<16x32xf32> -> vector<16x32xf32>
    %213 = vector.broadcast %1 : vector<1x32xf32> to vector<16x32xf32>
    %214 = arith.addf %212, %213 : vector<16x32xf32>
    %cst_96 = arith.constant 5.000000e-01 : f32
    %215 = vector.broadcast %cst_96 : f32 to vector<16x32xf32>
    %216 = arith.mulf %215, %214 : vector<16x32xf32>
    %cst_97 = arith.constant 0.707106769 : f32
    %217 = vector.broadcast %cst_97 : f32 to vector<16x32xf32>
    %218 = arith.mulf %214, %217 : vector<16x32xf32>
    %cst_98 = arith.constant 0.000000e+00 : f32
    %219 = vector.broadcast %cst_98 : f32 to vector<16x32xf32>
    %220 = arith.cmpf oge, %218, %219 : vector<16x32xf32>
    %cst_99 = arith.constant 1.000000e+00 : f32
    %cst_100 = arith.constant -1.000000e+00 : f32
    %221 = vector.broadcast %cst_99 : f32 to vector<16x32xf32>
    %222 = vector.broadcast %cst_100 : f32 to vector<16x32xf32>
    %223 = arith.select %220, %221, %222 : vector<16x32xi1>, vector<16x32xf32>
    %224 = math.absf %218 : vector<16x32xf32>
    %cst_101 = arith.constant 0.327591091 : f32
    %225 = vector.broadcast %cst_101 : f32 to vector<16x32xf32>
    %226 = arith.mulf %225, %224 : vector<16x32xf32>
    %cst_102 = arith.constant 1.000000e+00 : f32
    %227 = vector.broadcast %cst_102 : f32 to vector<16x32xf32>
    %228 = arith.addf %227, %226 : vector<16x32xf32>
    %cst_103 = arith.constant 1.000000e+00 : f32
    %229 = vector.broadcast %cst_103 : f32 to vector<16x32xf32>
    %230 = arith.divf %229, %228 : vector<16x32xf32>
    %cst_104 = arith.constant 1.06140542 : f32
    %231 = vector.broadcast %cst_104 : f32 to vector<16x32xf32>
    %232 = arith.mulf %231, %230 : vector<16x32xf32>
    %cst_105 = arith.constant -1.45315206 : f32
    %233 = vector.broadcast %cst_105 : f32 to vector<16x32xf32>
    %234 = arith.addf %232, %233 : vector<16x32xf32>
    %235 = arith.mulf %234, %230 : vector<16x32xf32>
    %cst_106 = arith.constant 1.42141378 : f32
    %236 = vector.broadcast %cst_106 : f32 to vector<16x32xf32>
    %237 = arith.addf %235, %236 : vector<16x32xf32>
    %238 = arith.mulf %237, %230 : vector<16x32xf32>
    %cst_107 = arith.constant -0.284496725 : f32
    %239 = vector.broadcast %cst_107 : f32 to vector<16x32xf32>
    %240 = arith.addf %238, %239 : vector<16x32xf32>
    %241 = arith.mulf %240, %230 : vector<16x32xf32>
    %cst_108 = arith.constant 0.254829586 : f32
    %242 = vector.broadcast %cst_108 : f32 to vector<16x32xf32>
    %243 = arith.addf %241, %242 : vector<16x32xf32>
    %244 = arith.mulf %243, %230 : vector<16x32xf32>
    %cst_109 = arith.constant 0.000000e+00 : f32
    %245 = vector.broadcast %cst_109 : f32 to vector<16x32xf32>
    %246 = arith.subf %245, %224 : vector<16x32xf32>
    %247 = arith.mulf %246, %224 : vector<16x32xf32>
    %248 = math.exp %247 : vector<16x32xf32>
    %249 = arith.mulf %244, %248 : vector<16x32xf32>
    %cst_110 = arith.constant 1.000000e+00 : f32
    %250 = vector.broadcast %cst_110 : f32 to vector<16x32xf32>
    %251 = arith.subf %250, %249 : vector<16x32xf32>
    %252 = arith.mulf %223, %251 : vector<16x32xf32>
    %cst_111 = arith.constant 1.000000e+00 : f32
    %253 = vector.broadcast %cst_111 : f32 to vector<16x32xf32>
    %254 = arith.addf %253, %252 : vector<16x32xf32>
    %255 = arith.mulf %216, %254 : vector<16x32xf32>
    %c0_112 = arith.constant 0 : index
    %c0_113 = arith.constant 0 : index
    %256 = vector.load %arg7[%c0_112, %c0_113] : memref<32x32xf32, #tpu.memory_space<vmem>>, vector<32x32xf32>
    %cst_114 = arith.constant dense<0.000000e+00> : vector<16x32xf32>
    %257 = tpu.matmul %255, %256, %cst_114 {dimension_numbers = #tpu.dot_dimension_numbers<[1], [0], [0], [1], [0, 0, 1, 1], [], []>} : vector<16x32xf32>, vector<32x32xf32>, vector<16x32xf32> -> vector<16x32xf32>
    %258 = vector.broadcast %2 : vector<1x32xf32> to vector<16x32xf32>
    %259 = arith.addf %257, %258 : vector<16x32xf32>
    %260 = arith.addf %210, %259 : vector<16x32xf32>
    %cst_115 = arith.constant dense<0.000000e+00> : vector<16xf32>
    %261 = vector.multi_reduction <add>, %260, %cst_115 [1] : vector<16x32xf32> to vector<16xf32>
    %262 = vector.shape_cast %261 : vector<16xf32> to vector<16x1xf32>
    %cst_116 = arith.constant 3.200000e+01 : f32
    %263 = vector.broadcast %cst_116 : f32 to vector<16x1xf32>
    %264 = arith.divf %262, %263 : vector<16x1xf32>
    %265 = vector.broadcast %264 : vector<16x1xf32> to vector<16x32xf32>
    %266 = arith.subf %260, %265 : vector<16x32xf32>
    %267 = arith.mulf %266, %266 : vector<16x32xf32>
    %cst_117 = arith.constant dense<0.000000e+00> : vector<16xf32>
    %268 = vector.multi_reduction <add>, %267, %cst_117 [1] : vector<16x32xf32> to vector<16xf32>
    %269 = vector.shape_cast %268 : vector<16xf32> to vector<16x1xf32>
    %cst_118 = arith.constant 3.200000e+01 : f32
    %270 = vector.broadcast %cst_118 : f32 to vector<16x1xf32>
    %271 = arith.divf %269, %270 : vector<16x1xf32>
    %cst_119 = arith.constant 9.99999974E-6 : f32
    %272 = vector.broadcast %cst_119 : f32 to vector<16x1xf32>
    %273 = arith.addf %271, %272 : vector<16x1xf32>
    %274 = math.rsqrt %273 : vector<16x1xf32>
    %275 = vector.broadcast %264 : vector<16x1xf32> to vector<16x32xf32>
    %276 = arith.subf %260, %275 : vector<16x32xf32>
    %277 = vector.broadcast %274 : vector<16x1xf32> to vector<16x32xf32>
    %278 = arith.mulf %276, %277 : vector<16x32xf32>
    %279 = vector.broadcast %5 : vector<1x32xf32> to vector<16x32xf32>
    %280 = arith.mulf %278, %279 : vector<16x32xf32>
    %281 = vector.broadcast %6 : vector<1x32xf32> to vector<16x32xf32>
    %282 = arith.addf %280, %281 : vector<16x32xf32>
    %c0_120 = arith.constant 0 : index
    %c0_121 = arith.constant 0 : index
    %283 = vector.load %arg9[%c0_120, %c0_121] : memref<16x32xf32, #tpu.memory_space<vmem>>, vector<16x32xf32>
    tpu.vector_store %arg9[%c0_120, %c0_121], %282 {strides = array<i32>} : memref<16x32xf32, #tpu.memory_space<vmem>>, vector<16x32xf32>,
    return
  }
  func.func @transform_0(%arg0: i32) -> (i32, i32) {
    %c0_i32 = arith.constant 0 : i32
    %c0_i32_0 = arith.constant 0 : i32
    return %arg0, %c0_i32 : i32, i32
  }
  func.func @transform_1(%arg0: i32) -> (i32, i32, i32) {
    %c0_i32 = arith.constant 0 : i32
    %c0_i32_0 = arith.constant 0 : i32
    %c0_i32_1 = arith.constant 0 : i32
    return %arg0, %c0_i32, %c0_i32_0 : i32, i32, i32
  }
  func.func @transform_2(%arg0: i32) -> (i32, i32) {
    %c0_i32 = arith.constant 0 : i32
    %c0_i32_0 = arith.constant 0 : i32
    %c0_i32_1 = arith.constant 0 : i32
    return %c0_i32, %c0_i32_0 : i32, i32
  }
  func.func @transform_3(%arg0: i32) -> (i32, i32) {
    %c0_i32 = arith.constant 0 : i32
    %c0_i32_0 = arith.constant 0 : i32
    %c0_i32_1 = arith.constant 0 : i32
    return %c0_i32, %c0_i32_0 : i32, i32
  }
  func.func @transform_4(%arg0: i32) -> (i32, i32) {
    %c0_i32 = arith.constant 0 : i32
    %c0_i32_0 = arith.constant 0 : i32
    %c0_i32_1 = arith.constant 0 : i32
    return %c0_i32, %c0_i32_0 : i32, i32
  }
  func.func @transform_5(%arg0: i32) -> (i32, i32) {
    %c0_i32 = arith.constant 0 : i32
    %c0_i32_0 = arith.constant 0 : i32
    %c0_i32_1 = arith.constant 0 : i32
    return %c0_i32, %c0_i32_0 : i32, i32
  }
  func.func @transform_6(%arg0: i32) -> (i32, i32) {
    %c0_i32 = arith.constant 0 : i32
    %c0_i32_0 = arith.constant 0 : i32
    %c0_i32_1 = arith.constant 0 : i32
    return %c0_i32, %c0_i32_0 : i32, i32
  }
  func.func @transform_7(%arg0: i32) -> (i32, i32) {
    %c0_i32 = arith.constant 0 : i32
    %c0_i32_0 = arith.constant 0 : i32
    %c0_i32_1 = arith.constant 0 : i32
    return %c0_i32, %c0_i32_0 : i32, i32
  }
  func.func @transform_8(%arg0: i32) -> (i32, i32) {
    %c0_i32 = arith.constant 0 : i32
    %c0_i32_0 = arith.constant 0 : i32
    return %arg0, %c0_i32 : i32, i32
  }
  func.func @transform_9(%arg0: i32) -> (i32, i32, i32) {
    %c0_i32 = arith.constant 0 : i32
    %c0_i32_0 = arith.constant 0 : i32
    %c0_i32_1 = arith.constant 0 : i32
    return %arg0, %c0_i32, %c0_i32_0 : i32, i32, i32
  }
}

</mosaic_0001>

<llo_original>
// kernel: tpu_custom_call.1
$region0: #{tpu_custom_call.1}
  #allocation0 [shape = 'u32[]', space=smem, size = 0x4, offset = 0x4, fixed_abs, tag = 'smem constant byte address 0x4 - core index']
  #allocation1 [shape = 'u32[144,128]{1,0:T(1,128)}', space=vmem, size = 0x12000, scoped, tag = 'internal scratch']
  #allocation2 [shape = 'f32[16,32]{1,0:T(8,128)}', space=vmem, size = 0x2000, scoped, tag = 'scratch operand']
  #allocation3 [shape = 'f32[16,32]{1,0:T(8,128)}', space=vmem, size = 0x2000, scoped, tag = 'scratch operand']
  %s0 = inlined_call_operand.hbm [shape: f32[16,32], index: 0, kind: input, shape index: {}]
  %s1 = inlined_call_operand.hbm [shape: f32[2,8,8], index: 1, kind: input, shape index: {}]
  %s2 = inlined_call_operand.hbm [shape: f32[32,96], index: 2, kind: input, shape index: {}]
  %s3 = inlined_call_operand.vmem [shape: f32[1,96], index: 3, kind: input, shape index: {}]
  %s4 = inlined_call_operand.hbm [shape: f32[32,32], index: 4, kind: input, shape index: {}]
  %s5 = inlined_call_operand.hbm [shape: f32[32,32], index: 5, kind: input, shape index: {}]
  %s6 = inlined_call_operand.hbm [shape: f32[32,32], index: 6, kind: input, shape index: {}]
  %s7 = inlined_call_operand.vmem [shape: f32[7,32], index: 7, kind: input, shape index: {}]
  %s8 = inlined_call_operand.hbm [shape: f32[16,32], index: 8, kind: output, shape index: {0}]
  %s9 = inlined_call_operand.hbm [shape: f32[2,8,8], index: 9, kind: output, shape index: {1}]
  %10 = xla_tuple %s8, %s9
  %s11 = sld [smem:[#allocation0]]
  $region74: #{tpu_custom_call.1} parent=0
    _
  %s13 = ssub.s32 1, %s11
  %s14 = scalar_select 0, %s13, %s11
  $region1: #{tpu_custom_call.1} parent=0
    #allocation4 [shape = 'u8[8192]{0}', space=vmem, size = 0x2000, scoped, tag = 'input window, operand 0, single buffered']
    #allocation5 [shape = 's32[1]{0}', space=sflag, size = 0x4, scoped, tag = 'scoped memory for tpu_custom_call.1']
    #allocation6 [shape = 's32[1]{0}', space=sflag, size = 0x4, scoped, tag = 'scoped memory for tpu_custom_call.1']
    #allocation7 [shape = 'u8[8192]{0}', space=vmem, size = 0x2000, scoped, tag = 'input window, operand 1, single buffered']
    #allocation8 [shape = 's32[1]{0}', space=sflag, size = 0x4, scoped, tag = 'scoped memory for tpu_custom_call.1']
    #allocation9 [shape = 'u8[16384]{0}', space=vmem, size = 0x4000, scoped, tag = 'input window, operand 2, single buffered']
    #allocation10 [shape = 'u8[16384]{0}', space=vmem, size = 0x4000, scoped, tag = 'input window, operand 4, single buffered']
    #allocation11 [shape = 's32[1]{0}', space=sflag, size = 0x4, scoped, tag = 'scoped memory for tpu_custom_call.1']
    #allocation12 [shape = 'u8[16384]{0}', space=vmem, size = 0x4000, scoped, tag = 'input window, operand 5, single buffered']
    #allocation13 [shape = 'u8[16384]{0}', space=vmem, size = 0x4000, scoped, tag = 'input window, operand 6, single buffered']
    #allocation14 [shape = 's32[1]{0}', space=sflag, size = 0x4, scoped, tag = 'scoped memory for tpu_custom_call.1']
    #allocation15 [shape = 'u8[8192]{0}', space=vmem, size = 0x2000, scoped, tag = 'output window, operand 0, single buffered']
    #allocation16 [shape = 'u8[8192]{0}', space=vmem, size = 0x2000, scoped, tag = 'output window, operand 1, single buffered']
    #allocation17 [shape = 's32[1]{0}', space=sflag, size = 0x4, scoped, tag = 'scoped memory for tpu_custom_call.1']
    %15 = vsyncpa [#allocation5], 0
    %16 = vsyncpa [#allocation8], 0
    %17 = vsyncpa [#allocation11], 0
    %18 = vsyncpa [#allocation14], 0
    %19 = vsyncpa [#allocation6], 0
    %20 = vsyncpa [#allocation17], 0
    // Predicated region
    $region2: #{tpu_custom_call.1} parent=1 // pred_check
      _
    $region3: #{tpu_custom_call.1} parent=1 // pred_check_branch
      %22 = sbr.rel (0) target = $region5
    $region4: #{tpu_custom_call.1} parent=1 // pred_region
      %s24 = ssub.s32 256, 256
      %25 = vsyncadd [#allocation5], %s24
      %s26 = sshll.u32 [#allocation4], 4
      %s27 = int_to_ptr.vmem [resolvable:$true] %s26
      %32 = dma.hbm_to_vmem [thread:$0]  %s0, 256, %s27, [#allocation5], 128, 128, 8
    $region5: #{tpu_custom_call.1} parent=1 // pred_fallthru
      _
    // Predicated region
    $region6: #{tpu_custom_call.1} parent=1 // pred_check
      _
    $region7: #{tpu_custom_call.1} parent=1 // pred_check_branch
      %34 = sbr.rel (0) target = $region9
    $region8: #{tpu_custom_call.1} parent=1 // pred_region
      %s36 = ssub.s32 256, 256
      %37 = vsyncadd [#allocation8], %s36
      %s38 = sshll.u32 [#allocation7], 4
      %s39 = int_to_ptr.vmem [resolvable:$true] %s38
      %44 = dma.hbm_to_vmem [thread:$0]  %s1, 256, %s39, [#allocation8], 128, 128, 8
    $region9: #{tpu_custom_call.1} parent=1 // pred_fallthru
      _
    // Predicated region
    $region10: #{tpu_custom_call.1} parent=1 // pred_check
      _
    $region11: #{tpu_custom_call.1} parent=1 // pred_check_branch
      %46 = sbr.rel (0) target = $region13
    $region12: #{tpu_custom_call.1} parent=1 // pred_region
      %s48 = ssub.s32 512, 512
      %49 = vsyncadd [#allocation8], %s48
      %s50 = sshll.u32 [#allocation9], 4
      %s51 = int_to_ptr.vmem [resolvable:$true] %s50
      %56 = dma.hbm_to_vmem [thread:$0]  %s2, 512, %s51, [#allocation8], 128, 128, 8
    $region13: #{tpu_custom_call.1} parent=1 // pred_fallthru
      _
    // Predicated region
    $region14: #{tpu_custom_call.1} parent=1 // pred_check
      _
    $region15: #{tpu_custom_call.1} parent=1 // pred_check_branch
      %58 = sbr.rel (0) target = $region17
    $region16: #{tpu_custom_call.1} parent=1 // pred_region
      _
    $region17: #{tpu_custom_call.1} parent=1 // pred_fallthru
      _
    // Predicated region
    $region18: #{tpu_custom_call.1} parent=1 // pred_check
      _
    $region19: #{tpu_custom_call.1} parent=1 // pred_check_branch
      %60 = sbr.rel (0) target = $region21
    $region20: #{tpu_custom_call.1} parent=1 // pred_region
      %s62 = ssub.s32 512, 512
      %63 = vsyncadd [#allocation11], %s62
      %s64 = sshll.u32 [#allocation10], 4
      %s65 = int_to_ptr.vmem [resolvable:$true] %s64
      %70 = dma.hbm_to_vmem [thread:$0]  %s4, 512, %s65, [#allocation11], 128, 128, 8
    $region21: #{tpu_custom_call.1} parent=1 // pred_fallthru
      _
    // Predicated region
    $region22: #{tpu_custom_call.1} parent=1 // pred_check
      _
    $region23: #{tpu_custom_call.1} parent=1 // pred_check_branch
      %72 = sbr.rel (0) target = $region25
    $region24: #{tpu_custom_call.1} parent=1 // pred_region
      %s74 = ssub.s32 512, 512
      %75 = vsyncadd [#allocation11], %s74
      %s76 = sshll.u32 [#allocation12], 4
      %s77 = int_to_ptr.vmem [resolvable:$true] %s76
      %82 = dma.hbm_to_vmem [thread:$0]  %s5, 512, %s77, [#allocation11], 128, 128, 8
    $region25: #{tpu_custom_call.1} parent=1 // pred_fallthru
      _
    // Predicated region
    $region26: #{tpu_custom_call.1} parent=1 // pred_check
      _
    $region27: #{tpu_custom_call.1} parent=1 // pred_check_branch
      %84 = sbr.rel (0) target = $region29
    $region28: #{tpu_custom_call.1} parent=1 // pred_region
      %s86 = ssub.s32 512, 512
      %87 = vsyncadd [#allocation14], %s86
      %s88 = sshll.u32 [#allocation13], 4
      %s89 = int_to_ptr.vmem [resolvable:$true] %s88
      %94 = dma.hbm_to_vmem [thread:$0]  %s6, 512, %s89, [#allocation14], 128, 128, 8
    $region29: #{tpu_custom_call.1} parent=1 // pred_fallthru
      _
    // Predicated region
    $region30: #{tpu_custom_call.1} parent=1 // pred_check
      _
    $region31: #{tpu_custom_call.1} parent=1 // pred_check_branch
      %96 = sbr.rel (0) target = $region33
    $region32: #{tpu_custom_call.1} parent=1 // pred_region
      _
    $region33: #{tpu_custom_call.1} parent=1 // pred_fallthru
      _
    // Predicated region
    $region34: #{tpu_custom_call.1} parent=1 // pred_check
      _
    $region35: #{tpu_custom_call.1} parent=1 // pred_check_branch
      %98 = sbr.rel (0) target = $region37
    $region36: #{tpu_custom_call.1} parent=1 // pred_region
      %99 = dma.done [#allocation5], 256
    $region37: #{tpu_custom_call.1} parent=1 // pred_fallthru
      _
    // Predicated region
    $region38: #{tpu_custom_call.1} parent=1 // pred_check
      _
    $region39: #{tpu_custom_call.1} parent=1 // pred_check_branch
      %101 = sbr.rel (0) target = $region41
    $region40: #{tpu_custom_call.1} parent=1 // pred_region
      %102 = dma.done [#allocation8], 256
    $region41: #{tpu_custom_call.1} parent=1 // pred_fallthru
      _
    // Predicated region
    $region42: #{tpu_custom_call.1} parent=1 // pred_check
      _
    $region43: #{tpu_custom_call.1} parent=1 // pred_check_branch
      %104 = sbr.rel (0) target = $region45
    $region44: #{tpu_custom_call.1} parent=1 // pred_region
      %105 = dma.done [#allocation8], 512
    $region45: #{tpu_custom_call.1} parent=1 // pred_fallthru
      _
    // Predicated region
    $region46: #{tpu_custom_call.1} parent=1 // pred_check
      _
    $region47: #{tpu_custom_call.1} parent=1 // pred_check_branch
      %107 = sbr.rel (0) target = $region49
    $region48: #{tpu_custom_call.1} parent=1 // pred_region
      %108 = dma.done [#allocation11], 512
    $region49: #{tpu_custom_call.1} parent=1 // pred_fallthru
      _
    // Predicated region
    $region50: #{tpu_custom_call.1} parent=1 // pred_check
      _
    $region51: #{tpu_custom_call.1} parent=1 // pred_check_branch
      %110 = sbr.rel (0) target = $region53
    $region52: #{tpu_custom_call.1} parent=1 // pred_region
      %111 = dma.done [#allocation11], 512
    $region53: #{tpu_custom_call.1} parent=1 // pred_fallthru
      _
    // Predicated region
    $region54: #{tpu_custom_call.1} parent=1 // pred_check
      _
    $region55: #{tpu_custom_call.1} parent=1 // pred_check_branch
      %113 = sbr.rel (0) target = $region57
    $region56: #{tpu_custom_call.1} parent=1 // pred_region
      %114 = dma.done [#allocation14], 512
    $region57: #{tpu_custom_call.1} parent=1 // pred_fallthru
      _
    %v115 = vld [vmem:[%s7] sm:$0x1]
    %v116 = vld [vmem:[%s7 + $0x1] sm:$0x1]
    %v117 = vld [vmem:[%s7 + $0x2] sm:$0x1]
    %v118 = vld [vmem:[%s7 + $0x3] sm:$0x1]
    %v119 = vld [vmem:[%s7 + $0x4] sm:$0x1]
    %v120 = vld [vmem:[%s7 + $0x5] sm:$0x1]
    %v121 = vld [vmem:[%s7 + $0x6] sm:$0x1]
    %v122 = vld [vmem:[#allocation4] sm:$0xff]
    %v123 = vld [vmem:[#allocation4 + $0x8] sm:$0xff]
    %v124 = vld [vmem:[#allocation9] sm:$0xff]
    %v125 = vld [vmem:[#allocation9 + $0x8] sm:$0xff]
    %v126 = vld [vmem:[#allocation9 + $0x10] sm:$0xff]
    %v127 = vld [vmem:[#allocation9 + $0x18] sm:$0xff]
    %v128 = vld [vmem:[%s3] sm:$0x1]
    %v130 = vlaneseq
    %v131 = vshrl.u32 %v130, 7
    %v132 = vsub.s32 0, %v131
    %v133 = vrot.slane %v128, %v132
    %vm135 = vcmask 261120
    %v137 = vsel %vm135, %v122, 0
    %v140 = vsel %vm135, %v123, 0
    %142 = vmatprep.subr.mxu0 0.0
    %143 = vmatpush1.msra.mxu0 %v124
    %144 = vmatprep.subr.mxu0 0.0
    %145 = vmatpush1.msra.mxu0 %v125
    %146 = vmatprep.subr.mxu0 0.0
    %147 = vmatpush1.msra.mxu0 %v126
    %148 = vmatprep.subr.mxu0 0.0
    %149 = vmatpush1.msra.mxu0 %v127
    %150 = vmatprep.subr.mxu0 0.0
    %151 = vmatpush1.msra.mxu0 0.0
    %152 = vmatprep.subr.mxu0 0.0
    %153 = vmatpush1.msra.mxu0 0.0
    %154 = vmatprep.subr.mxu0 0.0
    %155 = vmatpush1.msra.mxu0 0.0
    %156 = vmatprep.subr.mxu0 0.0
    %157 = vmatpush1.msra.mxu0 0.0
    %158 = vmatprep.subr.mxu0 0.0
    %159 = vmatpush1.msra.mxu0 0.0
    %160 = vmatprep.subr.mxu0 0.0
    %161 = vmatpush1.msra.mxu0 0.0
    %162 = vmatprep.subr.mxu0 0.0
    %163 = vmatpush1.msra.mxu0 0.0
    %164 = vmatprep.subr.mxu0 0.0
    %165 = vmatpush1.msra.mxu0 0.0
    %166 = vmatprep.subr.mxu0 0.0
    %167 = vmatpush1.msra.mxu0 0.0
    %168 = vmatprep.subr.mxu0 0.0
    %169 = vmatpush1.msra.mxu0 0.0
    %170 = vmatprep.subr.mxu0 0.0
    %171 = vmatpush1.msra.mxu0 0.0
    %172 = vmatprep.subr.mxu0 0.0
    %173 = vmatpush1.msra.mxu0 0.0
    %174 = vmatprep.subr.mxu0 0.0
    %175 = vmatpush1.msra.mxu0 0.0
    %176 = vmatprep.subr.mxu0 0.0
    %177 = vmatpush1.msra.mxu0 0.0
    %178 = vmatprep.subr.mxu0 0.0
    %179 = vmatpush1.msra.mxu0 0.0
    %180 = vmatprep.subr.mxu0 0.0
    %181 = vmatpush1.msra.mxu0 0.0
    %182 = vmatprep.subr.mxu0 0.0
    %183 = vmatpush1.msra.mxu0 0.0
    %184 = vmatprep.subr.mxu0 0.0
    %185 = vmatpush1.msra.mxu0 0.0
    %186 = vmatprep.subr.mxu0 0.0
    %187 = vmatpush1.msra.mxu0 0.0
    %188 = vmatprep.subr.mxu0 0.0
    %189 = vmatpush1.msra.mxu0 0.0
    %190 = vmatprep.subr.mxu0 0.0
    %191 = vmatpush1.msra.mxu0 0.0
    %192 = vmatprep.subr.mxu0 0.0
    %193 = vmatpush1.msra.mxu0 0.0
    %194 = vmatprep.subr.mxu0 0.0
    %195 = vmatpush1.msra.mxu0 0.0
    %196 = vmatprep.subr.mxu0 0.0
    %197 = vmatpush1.msra.mxu0 0.0
    %198 = vmatprep.subr.mxu0 0.0
    %199 = vmatpush1.msra.mxu0 0.0
    %200 = vmatprep.subr.mxu0 0.0
    %201 = vmatpush1.msra.mxu0 0.0
    %202 = vmatprep.subr.mxu0 0.0
    %203 = vmatpush1.msra.mxu0 0.0
    %204 = vmatprep.subr.mxu0 0.0
    %205 = vmatpush1.msra.mxu0 0.0
    %206 = vmatprep.mubr.f32.mxu0 0.0
    %207 = vmatmul.mubr.f32.gmra.mrb[0].mxu0 %v137
    %v208 = vpop.f32.mrb[0].mxu0
    %v209 = vadd.f32 %v133, %v208
    %v210 = vpop.f32.mrb[0].mxu0
    %211 = vmatprep.mubr.f32.mxu0 0.0
    %212 = vmatmul.mubr.f32.gmra.mrb[0].mxu0 %v140
    %v213 = vpop.f32.mrb[0].mxu0
    %v214 = vadd.f32 %v133, %v213
    %v215 = vpop.f32.mrb[0].mxu0
    %216 = vdwg.mxu0
    %v217 = vmul.f32 %v209, 0.35355338
    %v218 = vmul.f32 %v214, 0.35355338
    %220 = vrot.lane.b32.xlu0 %v209, 96
    %v221 = vpop.permute.xlu0 %220
    %vm222 = vcmask 64512
    %v224 = vsel %vm222, %v217, 0
    %v226 = vsel %vm222, %v221, 0
    %228 = vmatprep.subr.mxu0 0.0
    %229 = vmatpush1.xpose.msra.mxu0 %v226
    %230 = vmatprep.subr.mxu0 0.0
    %231 = vmatpush1.xpose.msra.mxu0 0.0
    %232 = vmatprep.subr.mxu0 0.0
    %233 = vmatpush1.xpose.msra.mxu0 0.0
    %234 = vmatprep.subr.mxu0 0.0
    %235 = vmatpush1.xpose.msra.mxu0 0.0
    %236 = vmatprep.subr.mxu0 0.0
    %237 = vmatpush1.xpose.msra.mxu0 0.0
    %238 = vmatprep.subr.mxu0 0.0
    %239 = vmatpush1.xpose.msra.mxu0 0.0
    %240 = vmatprep.subr.mxu0 0.0
    %241 = vmatpush1.xpose.msra.mxu0 0.0
    %242 = vmatprep.subr.mxu0 0.0
    %243 = vmatpush1.xpose.msra.mxu0 0.0
    %244 = vmatprep.subr.mxu0 0.0
    %245 = vmatpush1.xpose.msra.mxu0 0.0
    %246 = vmatprep.subr.mxu0 0.0
    %247 = vmatpush1.xpose.msra.mxu0 0.0
    %248 = vmatprep.subr.mxu0 0.0
    %249 = vmatpush1.xpose.msra.mxu0 0.0
    %250 = vmatprep.subr.mxu0 0.0
    %251 = vmatpush1.xpose.msra.mxu0 0.0
    %252 = vmatprep.subr.mxu0 0.0
    %253 = vmatpush1.xpose.msra.mxu0 0.0
    %254 = vmatprep.subr.mxu0 0.0
    %255 = vmatpush1.xpose.msra.mxu0 0.0
    %256 = vmatprep.subr.mxu0 0.0
    %257 = vmatpush1.xpose.msra.mxu0 0.0
    %258 = vmatprep.subr.mxu0 0.0
    %259 = vmatpush1.xpose.msra.mxu0 0.0
    %260 = vmatprep.subr.mxu0 0.0
    %261 = vmatpush1.xpose.msra.mxu0 0.0
    %262 = vmatprep.subr.mxu0 0.0
    %263 = vmatpush1.xpose.msra.mxu0 0.0
    %264 = vmatprep.subr.mxu0 0.0
    %265 = vmatpush1.xpose.msra.mxu0 0.0
    %266 = vmatprep.subr.mxu0 0.0
    %267 = vmatpush1.xpose.msra.mxu0 0.0
    %268 = vmatprep.subr.mxu0 0.0
    %269 = vmatpush1.xpose.msra.mxu0 0.0
    %270 = vmatprep.subr.mxu0 0.0
    %271 = vmatpush1.xpose.msra.mxu0 0.0
    %272 = vmatprep.subr.mxu0 0.0
    %273 = vmatpush1.xpose.msra.mxu0 0.0
    %274 = vmatprep.subr.mxu0 0.0
    %275 = vmatpush1.xpose.msra.mxu0 0.0
    %276 = vmatprep.subr.mxu0 0.0
    %277 = vmatpush1.xpose.msra.mxu0 0.0
    %278 = vmatprep.subr.mxu0 0.0
    %279 = vmatpush1.xpose.msra.mxu0 0.0
    %280 = vmatprep.subr.mxu0 0.0
    %281 = vmatpush1.xpose.msra.mxu0 0.0
    %282 = vmatprep.subr.mxu0 0.0
    %283 = vmatpush1.xpose.msra.mxu0 0.0
    %284 = vmatprep.subr.mxu0 0.0
    %285 = vmatpush1.xpose.msra.mxu0 0.0
    %286 = vmatprep.subr.mxu0 0.0
    %287 = vmatpush1.xpose.msra.mxu0 0.0
    %288 = vmatprep.subr.mxu0 0.0
    %289 = vmatpush1.xpose.msra.mxu0 0.0
    %290 = vmatprep.subr.mxu0 0.0
    %291 = vmatpush1.xpose.msra.mxu0 0.0
    %292 = vmatprep.mubr.f32.mxu0 0.0
    %293 = vmatmul.mubr.f32.gmra.mrb[0].mxu0 %v224
    %v294 = vpop.f32.mrb[0].mxu0
    %v295 = vadd.f32 0.0, %v294
    %v296 = vpop.f32.mrb[0].mxu0
    %297 = vdwg.mxu0
    %v298 = vsel %vm222, %v295, -inf
    %299 = vmax.xlane.f32.xlu0 %v298
    %v300 = vpop.xlane.xlu0 %299
    %v301 = vsub.f32 %v295, %v300
    %v302 = vmul.f32 %v301, 1.442695
    %v303 = vpow.pop %v302
    %v304 = vsel %vm222, %v303, 0.0
    %305 = vadd.xlane.f32.xlu0 %v304
    %v306 = vpop.xlane.xlu0 %305
    %v307 = vrcp.pop %v306
    %v308 = vmul.f32 %v303, %v307
    %v309 = vadd.f32 %v308, 0.0
    %310 = vrot.lane.b32.xlu0 %v209, 64
    %v311 = vpop.permute.xlu0 %310
    %v314 = vsel %vm222, %v308, 0
    %316 = vmatprep.subr.mxu0 0.0
    %317 = vmatpush1.msra.mxu0 %v311
    %318 = vmatprep.subr.mxu0 0.0
    %319 = vmatpush1.msra.mxu0 0.0
    %320 = vmatprep.subr.mxu0 0.0
    %321 = vmatpush1.msra.mxu0 0.0
    %322 = vmatprep.subr.mxu0 0.0
    %323 = vmatpush1.msra.mxu0 0.0
    %324 = vmatprep.subr.mxu0 0.0
    %325 = vmatpush1.msra.mxu0 0.0
    %326 = vmatprep.subr.mxu0 0.0
    %327 = vmatpush1.msra.mxu0 0.0
    %328 = vmatprep.subr.mxu0 0.0
    %329 = vmatpush1.msra.mxu0 0.0
    %330 = vmatprep.subr.mxu0 0.0
    %331 = vmatpush1.msra.mxu0 0.0
    %332 = vmatprep.subr.mxu0 0.0
    %333 = vmatpush1.msra.mxu0 0.0
    %334 = vmatprep.subr.mxu0 0.0
    %335 = vmatpush1.msra.mxu0 0.0
    %336 = vmatprep.subr.mxu0 0.0
    %337 = vmatpush1.msra.mxu0 0.0
    %338 = vmatprep.subr.mxu0 0.0
    %339 = vmatpush1.msra.mxu0 0.0
    %340 = vmatprep.subr.mxu0 0.0
    %341 = vmatpush1.msra.mxu0 0.0
    %342 = vmatprep.subr.mxu0 0.0
    %343 = vmatpush1.msra.mxu0 0.0
    %344 = vmatprep.subr.mxu0 0.0
    %345 = vmatpush1.msra.mxu0 0.0
    %346 = vmatprep.subr.mxu0 0.0
    %347 = vmatpush1.msra.mxu0 0.0
    %348 = vmatprep.subr.mxu0 0.0
    %349 = vmatpush1.msra.mxu0 0.0
    %350 = vmatprep.subr.mxu0 0.0
    %351 = vmatpush1.msra.mxu0 0.0
    %352 = vmatprep.subr.mxu0 0.0
    %353 = vmatpush1.msra.mxu0 0.0
    %354 = vmatprep.subr.mxu0 0.0
    %355 = vmatpush1.msra.mxu0 0.0
    %356 = vmatprep.subr.mxu0 0.0
    %357 = vmatpush1.msra.mxu0 0.0
    %358 = vmatprep.subr.mxu0 0.0
    %359 = vmatpush1.msra.mxu0 0.0
    %360 = vmatprep.subr.mxu0 0.0
    %361 = vmatpush1.msra.mxu0 0.0
    %362 = vmatprep.subr.mxu0 0.0
    %363 = vmatpush1.msra.mxu0 0.0
    %364 = vmatprep.subr.mxu0 0.0
    %365 = vmatpush1.msra.mxu0 0.0
    %366 = vmatprep.subr.mxu0 0.0
    %367 = vmatpush1.msra.mxu0 0.0
    %368 = vmatprep.subr.mxu0 0.0
    %369 = vmatpush1.msra.mxu0 0.0
    %370 = vmatprep.subr.mxu0 0.0
    %371 = vmatpush1.msra.mxu0 0.0
    %372 = vmatprep.subr.mxu0 0.0
    %373 = vmatpush1.msra.mxu0 0.0
    %374 = vmatprep.subr.mxu0 0.0
    %375 = vmatpush1.msra.mxu0 0.0
    %376 = vmatprep.subr.mxu0 0.0
    %377 = vmatpush1.msra.mxu0 0.0
    %378 = vmatprep.subr.mxu0 0.0
    %379 = vmatpush1.msra.mxu0 0.0
    %380 = vmatprep.mubr.f32.mxu0 0.0
    %381 = vmatmul.mubr.f32.gmra.mrb[0].mxu0 %v314
    %v382 = vpop.f32.mrb[0].mxu0
    %v383 = vadd.f32 0.0, %v382
    %v384 = vpop.f32.mrb[0].mxu0
    %385 = vdwg.mxu0
    %386 = vst.msk [vmem:[#allocation2] sm:$0xff] %vm222, %v383
    %387 = vrot.lane.b32.xlu0 %v217, 120
    %v388 = vpop.permute.xlu0 %387
    %389 = vrot.lane.b32.xlu0 %v209, 88
    %v390 = vpop.permute.xlu0 %389
    %v391 = vsel %vm222, %v388, 0
    %v393 = vsel %vm222, %v390, 0
    %395 = vmatprep.subr.mxu0 0.0
    %396 = vmatpush1.xpose.msra.mxu0 %v393
    %397 = vmatprep.subr.mxu0 0.0
    %398 = vmatpush1.xpose.msra.mxu0 0.0
    %399 = vmatprep.subr.mxu0 0.0
    %400 = vmatpush1.xpose.msra.mxu0 0.0
    %401 = vmatprep.subr.mxu0 0.0
    %402 = vmatpush1.xpose.msra.mxu0 0.0
    %403 = vmatprep.subr.mxu0 0.0
    %404 = vmatpush1.xpose.msra.mxu0 0.0
    %405 = vmatprep.subr.mxu0 0.0
    %406 = vmatpush1.xpose.msra.mxu0 0.0
    %407 = vmatprep.subr.mxu0 0.0
    %408 = vmatpush1.xpose.msra.mxu0 0.0
    %409 = vmatprep.subr.mxu0 0.0
    %410 = vmatpush1.xpose.msra.mxu0 0.0
    %411 = vmatprep.subr.mxu0 0.0
    %412 = vmatpush1.xpose.msra.mxu0 0.0
    %413 = vmatprep.subr.mxu0 0.0
    %414 = vmatpush1.xpose.msra.mxu0 0.0
    %415 = vmatprep.subr.mxu0 0.0
    %416 = vmatpush1.xpose.msra.mxu0 0.0
    %417 = vmatprep.subr.mxu0 0.0
    %418 = vmatpush1.xpose.msra.mxu0 0.0
    %419 = vmatprep.subr.mxu0 0.0
    %420 = vmatpush1.xpose.msra.mxu0 0.0
    %421 = vmatprep.subr.mxu0 0.0
    %422 = vmatpush1.xpose.msra.mxu0 0.0
    %423 = vmatprep.subr.mxu0 0.0
    %424 = vmatpush1.xpose.msra.mxu0 0.0
    %425 = vmatprep.subr.mxu0 0.0
    %426 = vmatpush1.xpose.msra.mxu0 0.0
    %427 = vmatprep.subr.mxu0 0.0
    %428 = vmatpush1.xpose.msra.mxu0 0.0
    %429 = vmatprep.subr.mxu0 0.0
    %430 = vmatpush1.xpose.msra.mxu0 0.0
    %431 = vmatprep.subr.mxu0 0.0
    %432 = vmatpush1.xpose.msra.mxu0 0.0
    %433 = vmatprep.subr.mxu0 0.0
    %434 = vmatpush1.xpose.msra.mxu0 0.0
    %435 = vmatprep.subr.mxu0 0.0
    %436 = vmatpush1.xpose.msra.mxu0 0.0
    %437 = vmatprep.subr.mxu0 0.0
    %438 = vmatpush1.xpose.msra.mxu0 0.0
    %439 = vmatprep.subr.mxu0 0.0
    %440 = vmatpush1.xpose.msra.mxu0 0.0
    %441 = vmatprep.subr.mxu0 0.0
    %442 = vmatpush1.xpose.msra.mxu0 0.0
    %443 = vmatprep.subr.mxu0 0.0
    %444 = vmatpush1.xpose.msra.mxu0 0.0
    %445 = vmatprep.subr.mxu0 0.0
    %446 = vmatpush1.xpose.msra.mxu0 0.0
    %447 = vmatprep.subr.mxu0 0.0
    %448 = vmatpush1.xpose.msra.mxu0 0.0
    %449 = vmatprep.subr.mxu0 0.0
    %450 = vmatpush1.xpose.msra.mxu0 0.0
    %451 = vmatprep.subr.mxu0 0.0
    %452 = vmatpush1.xpose.msra.mxu0 0.0
    %453 = vmatprep.subr.mxu0 0.0
    %454 = vmatpush1.xpose.msra.mxu0 0.0
    %455 = vmatprep.subr.mxu0 0.0
    %456 = vmatpush1.xpose.msra.mxu0 0.0
    %457 = vmatprep.subr.mxu0 0.0
    %458 = vmatpush1.xpose.msra.mxu0 0.0
    %459 = vmatprep.mubr.f32.mxu0 0.0
    %460 = vmatmul.mubr.f32.gmra.mrb[0].mxu0 %v391
    %v461 = vpop.f32.mrb[0].mxu0
    %v462 = vadd.f32 0.0, %v461
    %v463 = vpop.f32.mrb[0].mxu0
    %464 = vdwg.mxu0
    %v465 = vsel %vm222, %v462, -inf
    %466 = vmax.xlane.f32.xlu0 %v465
    %v467 = vpop.xlane.xlu0 %466
    %v468 = vsub.f32 %v462, %v467
    %v469 = vmul.f32 %v468, 1.442695
    %v470 = vpow.pop %v469
    %v471 = vsel %vm222, %v470, 0.0
    %472 = vadd.xlane.f32.xlu0 %v471
    %v473 = vpop.xlane.xlu0 %472
    %v474 = vrcp.pop %v473
    %v475 = vmul.f32 %v470, %v474
    %v476 = vadd.f32 %v309, %v475
    %477 = vrot.lane.b32.xlu0 %v209, 56
    %v478 = vpop.permute.xlu0 %477
    %v481 = vsel %vm222, %v475, 0
    %483 = vmatprep.subr.mxu0 0.0
    %484 = vmatpush1.msra.mxu0 %v478
    %485 = vmatprep.subr.mxu0 0.0
    %486 = vmatpush1.msra.mxu0 0.0
    %487 = vmatprep.subr.mxu0 0.0
    %488 = vmatpush1.msra.mxu0 0.0
    %489 = vmatprep.subr.mxu0 0.0
    %490 = vmatpush1.msra.mxu0 0.0
    %491 = vmatprep.subr.mxu0 0.0
    %492 = vmatpush1.msra.mxu0 0.0
    %493 = vmatprep.subr.mxu0 0.0
    %494 = vmatpush1.msra.mxu0 0.0
    %495 = vmatprep.subr.mxu0 0.0
    %496 = vmatpush1.msra.mxu0 0.0
    %497 = vmatprep.subr.mxu0 0.0
    %498 = vmatpush1.msra.mxu0 0.0
    %499 = vmatprep.subr.mxu0 0.0
    %500 = vmatpush1.msra.mxu0 0.0
    %501 = vmatprep.subr.mxu0 0.0
    %502 = vmatpush1.msra.mxu0 0.0
    %503 = vmatprep.subr.mxu0 0.0
    %504 = vmatpush1.msra.mxu0 0.0
    %505 = vmatprep.subr.mxu0 0.0
    %506 = vmatpush1.msra.mxu0 0.0
    %507 = vmatprep.subr.mxu0 0.0
    %508 = vmatpush1.msra.mxu0 0.0
    %509 = vmatprep.subr.mxu0 0.0
    %510 = vmatpush1.msra.mxu0 0.0
    %511 = vmatprep.subr.mxu0 0.0
    %512 = vmatpush1.msra.mxu0 0.0
    %513 = vmatprep.subr.mxu0 0.0
    %514 = vmatpush1.msra.mxu0 0.0
    %515 = vmatprep.subr.mxu0 0.0
    %516 = vmatpush1.msra.mxu0 0.0
    %517 = vmatprep.subr.mxu0 0.0
    %518 = vmatpush1.msra.mxu0 0.0
    %519 = vmatprep.subr.mxu0 0.0
    %520 = vmatpush1.msra.mxu0 0.0
    %521 = vmatprep.subr.mxu0 0.0
    %522 = vmatpush1.msra.mxu0 0.0
    %523 = vmatprep.subr.mxu0 0.0
    %524 = vmatpush1.msra.mxu0 0.0
    %525 = vmatprep.subr.mxu0 0.0
    %526 = vmatpush1.msra.mxu0 0.0
    %527 = vmatprep.subr.mxu0 0.0
    %528 = vmatpush1.msra.mxu0 0.0
    %529 = vmatprep.subr.mxu0 0.0
    %530 = vmatpush1.msra.mxu0 0.0
    %531 = vmatprep.subr.mxu0 0.0
    %532 = vmatpush1.msra.mxu0 0.0
    %533 = vmatprep.subr.mxu0 0.0
    %534 = vmatpush1.msra.mxu0 0.0
    %535 = vmatprep.subr.mxu0 0.0
    %536 = vmatpush1.msra.mxu0 0.0
    %537 = vmatprep.subr.mxu0 0.0
    %538 = vmatpush1.msra.mxu0 0.0
    %539 = vmatprep.subr.mxu0 0.0
    %540 = vmatpush1.msra.mxu0 0.0
    %541 = vmatprep.subr.mxu0 0.0
    %542 = vmatpush1.msra.mxu0 0.0
    %543 = vmatprep.subr.mxu0 0.0
    %544 = vmatpush1.msra.mxu0 0.0
    %545 = vmatprep.subr.mxu0 0.0
    %546 = vmatpush1.msra.mxu0 0.0
    %547 = vmatprep.mubr.f32.mxu0 0.0
    %548 = vmatmul.mubr.f32.gmra.mrb[0].mxu0 %v481
    %v549 = vpop.f32.mrb[0].mxu0
    %v550 = vadd.f32 0.0, %v549
    %v551 = vpop.f32.mrb[0].mxu0
    %552 = vdwg.mxu0
    %554 = vrot.lane.b32.xlu0 %v550, 8
    %v555 = vpop.permute.xlu0 %554
    %vm557 = vcmask 130112
    %558 = vst.msk [vmem:[#allocation2] sm:$0xff] %vm557, %v555
    %559 = vrot.lane.b32.xlu0 %v217, 112
    %v560 = vpop.permute.xlu0 %559
    %561 = vrot.lane.b32.xlu0 %v209, 80
    %v562 = vpop.permute.xlu0 %561
    %v563 = vsel %vm222, %v560, 0
    %v565 = vsel %vm222, %v562, 0
    %567 = vmatprep.subr.mxu0 0.0
    %568 = vmatpush1.xpose.msra.mxu0 %v565
    %569 = vmatprep.subr.mxu0 0.0
    %570 = vmatpush1.xpose.msra.mxu0 0.0
    %571 = vmatprep.subr.mxu0 0.0
    %572 = vmatpush1.xpose.msra.mxu0 0.0
    %573 = vmatprep.subr.mxu0 0.0
    %574 = vmatpush1.xpose.msra.mxu0 0.0
    %575 = vmatprep.subr.mxu0 0.0
    %576 = vmatpush1.xpose.msra.mxu0 0.0
    %577 = vmatprep.subr.mxu0 0.0
    %578 = vmatpush1.xpose.msra.mxu0 0.0
    %579 = vmatprep.subr.mxu0 0.0
    %580 = vmatpush1.xpose.msra.mxu0 0.0
    %581 = vmatprep.subr.mxu0 0.0
    %582 = vmatpush1.xpose.msra.mxu0 0.0
    %583 = vmatprep.subr.mxu0 0.0
    %584 = vmatpush1.xpose.msra.mxu0 0.0
    %585 = vmatprep.subr.mxu0 0.0
    %586 = vmatpush1.xpose.msra.mxu0 0.0
    %587 = vmatprep.subr.mxu0 0.0
    %588 = vmatpush1.xpose.msra.mxu0 0.0
    %589 = vmatprep.subr.mxu0 0.0
    %590 = vmatpush1.xpose.msra.mxu0 0.0
    %591 = vmatprep.subr.mxu0 0.0
    %592 = vmatpush1.xpose.msra.mxu0 0.0
    %593 = vmatprep.subr.mxu0 0.0
    %594 = vmatpush1.xpose.msra.mxu0 0.0
    %595 = vmatprep.subr.mxu0 0.0
    %596 = vmatpush1.xpose.msra.mxu0 0.0
    %597 = vmatprep.subr.mxu0 0.0
    %598 = vmatpush1.xpose.msra.mxu0 0.0
    %599 = vmatprep.subr.mxu0 0.0
    %600 = vmatpush1.xpose.msra.mxu0 0.0
    %601 = vmatprep.subr.mxu0 0.0
    %602 = vmatpush1.xpose.msra.mxu0 0.0
    %603 = vmatprep.subr.mxu0 0.0
    %604 = vmatpush1.xpose.msra.mxu0 0.0
    %605 = vmatprep.subr.mxu0 0.0
    %606 = vmatpush1.xpose.msra.mxu0 0.0
    %607 = vmatprep.subr.mxu0 0.0
    %608 = vmatpush1.xpose.msra.mxu0 0.0
    %609 = vmatprep.subr.mxu0 0.0
    %610 = vmatpush1.xpose.msra.mxu0 0.0
    %611 = vmatprep.subr.mxu0 0.0
    %612 = vmatpush1.xpose.msra.mxu0 0.0
    %613 = vmatprep.subr.mxu0 0.0
    %614 = vmatpush1.xpose.msra.mxu0 0.0
    %615 = vmatprep.subr.mxu0 0.0
    %616 = vmatpush1.xpose.msra.mxu0 0.0
    %617 = vmatprep.subr.mxu0 0.0
    %618 = vmatpush1.xpose.msra.mxu0 0.0
    %619 = vmatprep.subr.mxu0 0.0
    %620 = vmatpush1.xpose.msra.mxu0 0.0
    %621 = vmatprep.subr.mxu0 0.0
    %622 = vmatpush1.xpose.msra.mxu0 0.0
    %623 = vmatprep.subr.mxu0 0.0
    %624 = vmatpush1.xpose.msra.mxu0 0.0
    %625 = vmatprep.subr.mxu0 0.0
    %626 = vmatpush1.xpose.msra.mxu0 0.0
    %627 = vmatprep.subr.mxu0 0.0
    %628 = vmatpush1.xpose.msra.mxu0 0.0
    %629 = vmatprep.subr.mxu0 0.0
    %630 = vmatpush1.xpose.msra.mxu0 0.0
    %631 = vmatprep.mubr.f32.mxu0 0.0
    %632 = vmatmul.mubr.f32.gmra.mrb[0].mxu0 %v563
    %v633 = vpop.f32.mrb[0].mxu0
    %v634 = vadd.f32 0.0, %v633
    %v635 = vpop.f32.mrb[0].mxu0
    %636 = vdwg.mxu0
    %v637 = vsel %vm222, %v634, -inf
    %638 = vmax.xlane.f32.xlu0 %v637
    %v639 = vpop.xlane.xlu0 %638
    %v640 = vsub.f32 %v634, %v639
    %v641 = vmul.f32 %v640, 1.442695
    %v642 = vpow.pop %v641
    %v643 = vsel %vm222, %v642, 0.0
    %644 = vadd.xlane.f32.xlu0 %v643
    %v645 = vpop.xlane.xlu0 %644
    %v646 = vrcp.pop %v645
    %v647 = vmul.f32 %v642, %v646
    %v648 = vadd.f32 %v476, %v647
    %649 = vrot.lane.b32.xlu0 %v209, 48
    %v650 = vpop.permute.xlu0 %649
    %v653 = vsel %vm222, %v647, 0
    %655 = vmatprep.subr.mxu0 0.0
    %656 = vmatpush1.msra.mxu0 %v650
    %657 = vmatprep.subr.mxu0 0.0
    %658 = vmatpush1.msra.mxu0 0.0
    %659 = vmatprep.subr.mxu0 0.0
    %660 = vmatpush1.msra.mxu0 0.0
    %661 = vmatprep.subr.mxu0 0.0
    %662 = vmatpush1.msra.mxu0 0.0
    %663 = vmatprep.subr.mxu0 0.0
    %664 = vmatpush1.msra.mxu0 0.0
    %665 = vmatprep.subr.mxu0 0.0
    %666 = vmatpush1.msra.mxu0 0.0
    %667 = vmatprep.subr.mxu0 0.0
    %668 = vmatpush1.msra.mxu0 0.0
    %669 = vmatprep.subr.mxu0 0.0
    %670 = vmatpush1.msra.mxu0 0.0
    %671 = vmatprep.subr.mxu0 0.0
    %672 = vmatpush1.msra.mxu0 0.0
    %673 = vmatprep.subr.mxu0 0.0
    %674 = vmatpush1.msra.mxu0 0.0
    %675 = vmatprep.subr.mxu0 0.0
    %676 = vmatpush1.msra.mxu0 0.0
    %677 = vmatprep.subr.mxu0 0.0
    %678 = vmatpush1.msra.mxu0 0.0
    %679 = vmatprep.subr.mxu0 0.0
    %680 = vmatpush1.msra.mxu0 0.0
    %681 = vmatprep.subr.mxu0 0.0
    %682 = vmatpush1.msra.mxu0 0.0
    %683 = vmatprep.subr.mxu0 0.0
    %684 = vmatpush1.msra.mxu0 0.0
    %685 = vmatprep.subr.mxu0 0.0
    %686 = vmatpush1.msra.mxu0 0.0
    %687 = vmatprep.subr.mxu0 0.0
    %688 = vmatpush1.msra.mxu0 0.0
    %689 = vmatprep.subr.mxu0 0.0
    %690 = vmatpush1.msra.mxu0 0.0
    %691 = vmatprep.subr.mxu0 0.0
    %692 = vmatpush1.msra.mxu0 0.0
    %693 = vmatprep.subr.mxu0 0.0
    %694 = vmatpush1.msra.mxu0 0.0
    %695 = vmatprep.subr.mxu0 0.0
    %696 = vmatpush1.msra.mxu0 0.0
    %697 = vmatprep.subr.mxu0 0.0
    %698 = vmatpush1.msra.mxu0 0.0
    %699 = vmatprep.subr.mxu0 0.0
    %700 = vmatpush1.msra.mxu0 0.0
    %701 = vmatprep.subr.mxu0 0.0
    %702 = vmatpush1.msra.mxu0 0.0
    %703 = vmatprep.subr.mxu0 0.0
    %704 = vmatpush1.msra.mxu0 0.0
    %705 = vmatprep.subr.mxu0 0.0
    %706 = vmatpush1.msra.mxu0 0.0
    %707 = vmatprep.subr.mxu0 0.0
    %708 = vmatpush1.msra.mxu0 0.0
    %709 = vmatprep.subr.mxu0 0.0
    %710 = vmatpush1.msra.mxu0 0.0
    %711 = vmatprep.subr.mxu0 0.0
    %712 = vmatpush1.msra.mxu0 0.0
    %713 = vmatprep.subr.mxu0 0.0
    %714 = vmatpush1.msra.mxu0 0.0
    %715 = vmatprep.subr.mxu0 0.0
    %716 = vmatpush1.msra.mxu0 0.0
    %717 = vmatprep.subr.mxu0 0.0
    %718 = vmatpush1.msra.mxu0 0.0
    %719 = vmatprep.mubr.f32.mxu0 0.0
    %720 = vmatmul.mubr.f32.gmra.mrb[0].mxu0 %v653
    %v721 = vpop.f32.mrb[0].mxu0
    %v722 = vadd.f32 0.0, %v721
    %v723 = vpop.f32.mrb[0].mxu0
    %724 = vdwg.mxu0
    %726 = vrot.lane.b32.xlu0 %v722, 16
    %v727 = vpop.permute.xlu0 %726
    %vm729 = vcmask 195712
    %730 = vst.msk [vmem:[#allocation2] sm:$0xff] %vm729, %v727
    %731 = vrot.lane.b32.xlu0 %v217, 104
    %v732 = vpop.permute.xlu0 %731
    %733 = vrot.lane.b32.xlu0 %v209, 72
    %v734 = vpop.permute.xlu0 %733
    %v735 = vsel %vm222, %v732, 0
    %v737 = vsel %vm222, %v734, 0
    %739 = vmatprep.subr.mxu0 0.0
    %740 = vmatpush1.xpose.msra.mxu0 %v737
    %741 = vmatprep.subr.mxu0 0.0
    %742 = vmatpush1.xpose.msra.mxu0 0.0
    %743 = vmatprep.subr.mxu0 0.0
    %744 = vmatpush1.xpose.msra.mxu0 0.0
    %745 = vmatprep.subr.mxu0 0.0
    %746 = vmatpush1.xpose.msra.mxu0 0.0
    %747 = vmatprep.subr.mxu0 0.0
    %748 = vmatpush1.xpose.msra.mxu0 0.0
    %749 = vmatprep.subr.mxu0 0.0
    %750 = vmatpush1.xpose.msra.mxu0 0.0
    %751 = vmatprep.subr.mxu0 0.0
    %752 = vmatpush1.xpose.msra.mxu0 0.0
    %753 = vmatprep.subr.mxu0 0.0
    %754 = vmatpush1.xpose.msra.mxu0 0.0
    %755 = vmatprep.subr.mxu0 0.0
    %756 = vmatpush1.xpose.msra.mxu0 0.0
    %757 = vmatprep.subr.mxu0 0.0
    %758 = vmatpush1.xpose.msra.mxu0 0.0
    %759 = vmatprep.subr.mxu0 0.0
    %760 = vmatpush1.xpose.msra.mxu0 0.0
    %761 = vmatprep.subr.mxu0 0.0
    %762 = vmatpush1.xpose.msra.mxu0 0.0
    %763 = vmatprep.subr.mxu0 0.0
    %764 = vmatpush1.xpose.msra.mxu0 0.0
    %765 = vmatprep.subr.mxu0 0.0
    %766 = vmatpush1.xpose.msra.mxu0 0.0
    %767 = vmatprep.subr.mxu0 0.0
    %768 = vmatpush1.xpose.msra.mxu0 0.0
    %769 = vmatprep.subr.mxu0 0.0
    %770 = vmatpush1.xpose.msra.mxu0 0.0
    %771 = vmatprep.subr.mxu0 0.0
    %772 = vmatpush1.xpose.msra.mxu0 0.0
    %773 = vmatprep.subr.mxu0 0.0
    %774 = vmatpush1.xpose.msra.mxu0 0.0
    %775 = vmatprep.subr.mxu0 0.0
    %776 = vmatpush1.xpose.msra.mxu0 0.0
    %777 = vmatprep.subr.mxu0 0.0
    %778 = vmatpush1.xpose.msra.mxu0 0.0
    %779 = vmatprep.subr.mxu0 0.0
    %780 = vmatpush1.xpose.msra.mxu0 0.0
    %781 = vmatprep.subr.mxu0 0.0
    %782 = vmatpush1.xpose.msra.mxu0 0.0
    %783 = vmatprep.subr.mxu0 0.0
    %784 = vmatpush1.xpose.msra.mxu0 0.0
    %785 = vmatprep.subr.mxu0 0.0
    %786 = vmatpush1.xpose.msra.mxu0 0.0
    %787 = vmatprep.subr.mxu0 0.0
    %788 = vmatpush1.xpose.msra.mxu0 0.0
    %789 = vmatprep.subr.mxu0 0.0
    %790 = vmatpush1.xpose.msra.mxu0 0.0
    %791 = vmatprep.subr.mxu0 0.0
    %792 = vmatpush1.xpose.msra.mxu0 0.0
    %793 = vmatprep.subr.mxu0 0.0
    %794 = vmatpush1.xpose.msra.mxu0 0.0
    %795 = vmatprep.subr.mxu0 0.0
    %796 = vmatpush1.xpose.msra.mxu0 0.0
    %797 = vmatprep.subr.mxu0 0.0
    %798 = vmatpush1.xpose.msra.mxu0 0.0
    %799 = vmatprep.subr.mxu0 0.0
    %800 = vmatpush1.xpose.msra.mxu0 0.0
    %801 = vmatprep.subr.mxu0 0.0
    %802 = vmatpush1.xpose.msra.mxu0 0.0
    %803 = vmatprep.mubr.f32.mxu0 0.0
    %804 = vmatmul.mubr.f32.gmra.mrb[0].mxu0 %v735
    %v805 = vpop.f32.mrb[0].mxu0
    %v806 = vadd.f32 0.0, %v805
    %v807 = vpop.f32.mrb[0].mxu0
    %808 = vdwg.mxu0
    %v809 = vsel %vm222, %v806, -inf
    %810 = vmax.xlane.f32.xlu0 %v809
    %v811 = vpop.xlane.xlu0 %810
    %v812 = vsub.f32 %v806, %v811
    %v813 = vmul.f32 %v812, 1.442695
    %v814 = vpow.pop %v813
    %v815 = vsel %vm222, %v814, 0.0
    %816 = vadd.xlane.f32.xlu0 %v815
    %v817 = vpop.xlane.xlu0 %816
    %v818 = vrcp.pop %v817
    %v819 = vmul.f32 %v814, %v818
    %v820 = vadd.f32 %v648, %v819
    %821 = vrot.lane.b32.xlu0 %v209, 40
    %v822 = vpop.permute.xlu0 %821
    %v825 = vsel %vm222, %v819, 0
    %827 = vmatprep.subr.mxu0 0.0
    %828 = vmatpush1.msra.mxu0 %v822
    %829 = vmatprep.subr.mxu0 0.0
    %830 = vmatpush1.msra.mxu0 0.0
    %831 = vmatprep.subr.mxu0 0.0
    %832 = vmatpush1.msra.mxu0 0.0
    %833 = vmatprep.subr.mxu0 0.0
    %834 = vmatpush1.msra.mxu0 0.0
    %835 = vmatprep.subr.mxu0 0.0
    %836 = vmatpush1.msra.mxu0 0.0
    %837 = vmatprep.subr.mxu0 0.0
    %838 = vmatpush1.msra.mxu0 0.0
    %839 = vmatprep.subr.mxu0 0.0
    %840 = vmatpush1.msra.mxu0 0.0
    %841 = vmatprep.subr.mxu0 0.0
    %842 = vmatpush1.msra.mxu0 0.0
    %843 = vmatprep.subr.mxu0 0.0
    %844 = vmatpush1.msra.mxu0 0.0
    %845 = vmatprep.subr.mxu0 0.0
    %846 = vmatpush1.msra.mxu0 0.0
    %847 = vmatprep.subr.mxu0 0.0
    %848 = vmatpush1.msra.mxu0 0.0
    %849 = vmatprep.subr.mxu0 0.0
    %850 = vmatpush1.msra.mxu0 0.0
    %851 = vmatprep.subr.mxu0 0.0
    %852 = vmatpush1.msra.mxu0 0.0
    %853 = vmatprep.subr.mxu0 0.0
    %854 = vmatpush1.msra.mxu0 0.0
    %855 = vmatprep.subr.mxu0 0.0
    %856 = vmatpush1.msra.mxu0 0.0
    %857 = vmatprep.subr.mxu0 0.0
    %858 = vmatpush1.msra.mxu0 0.0
    %859 = vmatprep.subr.mxu0 0.0
    %860 = vmatpush1.msra.mxu0 0.0
    %861 = vmatprep.subr.mxu0 0.0
    %862 = vmatpush1.msra.mxu0 0.0
    %863 = vmatprep.subr.mxu0 0.0
    %864 = vmatpush1.msra.mxu0 0.0
    %865 = vmatprep.subr.mxu0 0.0
    %866 = vmatpush1.msra.mxu0 0.0
    %867 = vmatprep.subr.mxu0 0.0
    %868 = vmatpush1.msra.mxu0 0.0
    %869 = vmatprep.subr.mxu0 0.0
    %870 = vmatpush1.msra.mxu0 0.0
    %871 = vmatprep.subr.mxu0 0.0
    %872 = vmatpush1.msra.mxu0 0.0
    %873 = vmatprep.subr.mxu0 0.0
    %874 = vmatpush1.msra.mxu0 0.0
    %875 = vmatprep.subr.mxu0 0.0
    %876 = vmatpush1.msra.mxu0 0.0
    %877 = vmatprep.subr.mxu0 0.0
    %878 = vmatpush1.msra.mxu0 0.0
    %879 = vmatprep.subr.mxu0 0.0
    %880 = vmatpush1.msra.mxu0 0.0
    %881 = vmatprep.subr.mxu0 0.0
    %882 = vmatpush1.msra.mxu0 0.0
    %883 = vmatprep.subr.mxu0 0.0
    %884 = vmatpush1.msra.mxu0 0.0
    %885 = vmatprep.subr.mxu0 0.0
    %886 = vmatpush1.msra.mxu0 0.0
    %887 = vmatprep.subr.mxu0 0.0
    %888 = vmatpush1.msra.mxu0 0.0
    %889 = vmatprep.subr.mxu0 0.0
    %890 = vmatpush1.msra.mxu0 0.0
    %891 = vmatprep.mubr.f32.mxu0 0.0
    %892 = vmatmul.mubr.f32.gmra.mrb[0].mxu0 %v825
    %v893 = vpop.f32.mrb[0].mxu0
    %v894 = vadd.f32 0.0, %v893
    %v895 = vpop.f32.mrb[0].mxu0
    %896 = vdwg.mxu0
    %898 = vrot.lane.b32.xlu0 %v894, 24
    %v899 = vpop.permute.xlu0 %898
    %vm901 = vcmask 261312
    %902 = vst.msk [vmem:[#allocation2] sm:$0xff] %vm901, %v899
    %v903 = vmul.f32 %v820, 0.25
    %904 = vst.msk [vmem:[#allocation16] sm:$0xff] %vm222, %v903
    %906 = vrot.lane.b32.xlu0 %v214, 96
    %v907 = vpop.permute.xlu0 %906
    %v909 = vsel %vm222, %v218, 0
    %v911 = vsel %vm222, %v907, 0
    %913 = vmatprep.subr.mxu0 0.0
    %914 = vmatpush1.xpose.msra.mxu0 %v911
    %915 = vmatprep.subr.mxu0 0.0
    %916 = vmatpush1.xpose.msra.mxu0 0.0
    %917 = vmatprep.subr.mxu0 0.0
    %918 = vmatpush1.xpose.msra.mxu0 0.0
    %919 = vmatprep.subr.mxu0 0.0
    %920 = vmatpush1.xpose.msra.mxu0 0.0
    %921 = vmatprep.subr.mxu0 0.0
    %922 = vmatpush1.xpose.msra.mxu0 0.0
    %923 = vmatprep.subr.mxu0 0.0
    %924 = vmatpush1.xpose.msra.mxu0 0.0
    %925 = vmatprep.subr.mxu0 0.0
    %926 = vmatpush1.xpose.msra.mxu0 0.0
    %927 = vmatprep.subr.mxu0 0.0
    %928 = vmatpush1.xpose.msra.mxu0 0.0
    %929 = vmatprep.subr.mxu0 0.0
    %930 = vmatpush1.xpose.msra.mxu0 0.0
    %931 = vmatprep.subr.mxu0 0.0
    %932 = vmatpush1.xpose.msra.mxu0 0.0
    %933 = vmatprep.subr.mxu0 0.0
    %934 = vmatpush1.xpose.msra.mxu0 0.0
    %935 = vmatprep.subr.mxu0 0.0
    %936 = vmatpush1.xpose.msra.mxu0 0.0
    %937 = vmatprep.subr.mxu0 0.0
    %938 = vmatpush1.xpose.msra.mxu0 0.0
    %939 = vmatprep.subr.mxu0 0.0
    %940 = vmatpush1.xpose.msra.mxu0 0.0
    %941 = vmatprep.subr.mxu0 0.0
    %942 = vmatpush1.xpose.msra.mxu0 0.0
    %943 = vmatprep.subr.mxu0 0.0
    %944 = vmatpush1.xpose.msra.mxu0 0.0
    %945 = vmatprep.subr.mxu0 0.0
    %946 = vmatpush1.xpose.msra.mxu0 0.0
    %947 = vmatprep.subr.mxu0 0.0
    %948 = vmatpush1.xpose.msra.mxu0 0.0
    %949 = vmatprep.subr.mxu0 0.0
    %950 = vmatpush1.xpose.msra.mxu0 0.0
    %951 = vmatprep.subr.mxu0 0.0
    %952 = vmatpush1.xpose.msra.mxu0 0.0
    %953 = vmatprep.subr.mxu0 0.0
    %954 = vmatpush1.xpose.msra.mxu0 0.0
    %955 = vmatprep.subr.mxu0 0.0
    %956 = vmatpush1.xpose.msra.mxu0 0.0
    %957 = vmatprep.subr.mxu0 0.0
    %958 = vmatpush1.xpose.msra.mxu0 0.0
    %959 = vmatprep.subr.mxu0 0.0
    %960 = vmatpush1.xpose.msra.mxu0 0.0
    %961 = vmatprep.subr.mxu0 0.0
    %962 = vmatpush1.xpose.msra.mxu0 0.0
    %963 = vmatprep.subr.mxu0 0.0
    %964 = vmatpush1.xpose.msra.mxu0 0.0
    %965 = vmatprep.subr.mxu0 0.0
    %966 = vmatpush1.xpose.msra.mxu0 0.0
    %967 = vmatprep.subr.mxu0 0.0
    %968 = vmatpush1.xpose.msra.mxu0 0.0
    %969 = vmatprep.subr.mxu0 0.0
    %970 = vmatpush1.xpose.msra.mxu0 0.0
    %971 = vmatprep.subr.mxu0 0.0
    %972 = vmatpush1.xpose.msra.mxu0 0.0
    %973 = vmatprep.subr.mxu0 0.0
    %974 = vmatpush1.xpose.msra.mxu0 0.0
    %975 = vmatprep.subr.mxu0 0.0
    %976 = vmatpush1.xpose.msra.mxu0 0.0
    %977 = vmatprep.mubr.f32.mxu0 0.0
    %978 = vmatmul.mubr.f32.gmra.mrb[0].mxu0 %v909
    %v979 = vpop.f32.mrb[0].mxu0
    %v980 = vadd.f32 0.0, %v979
    %v981 = vpop.f32.mrb[0].mxu0
    %982 = vdwg.mxu0
    %v983 = vsel %vm222, %v980, -inf
    %984 = vmax.xlane.f32.xlu0 %v983
    %v985 = vpop.xlane.xlu0 %984
    %v986 = vsub.f32 %v980, %v985
    %v987 = vmul.f32 %v986, 1.442695
    %v988 = vpow.pop %v987
    %v989 = vsel %vm222, %v988, 0.0
    %990 = vadd.xlane.f32.xlu0 %v989
    %v991 = vpop.xlane.xlu0 %990
    %v992 = vrcp.pop %v991
    %v993 = vmul.f32 %v988, %v992
    %v994 = vadd.f32 %v993, 0.0
    %995 = vrot.lane.b32.xlu0 %v214, 64
    %v996 = vpop.permute.xlu0 %995
    %v999 = vsel %vm222, %v993, 0
    %1001 = vmatprep.subr.mxu0 0.0
    %1002 = vmatpush1.msra.mxu0 %v996
    %1003 = vmatprep.subr.mxu0 0.0
    %1004 = vmatpush1.msra.mxu0 0.0
    %1005 = vmatprep.subr.mxu0 0.0
    %1006 = vmatpush1.msra.mxu0 0.0
    %1007 = vmatprep.subr.mxu0 0.0
    %1008 = vmatpush1.msra.mxu0 0.0
    %1009 = vmatprep.subr.mxu0 0.0
    %1010 = vmatpush1.msra.mxu0 0.0
    %1011 = vmatprep.subr.mxu0 0.0
    %1012 = vmatpush1.msra.mxu0 0.0
    %1013 = vmatprep.subr.mxu0 0.0
    %1014 = vmatpush1.msra.mxu0 0.0
    %1015 = vmatprep.subr.mxu0 0.0
    %1016 = vmatpush1.msra.mxu0 0.0
    %1017 = vmatprep.subr.mxu0 0.0
    %1018 = vmatpush1.msra.mxu0 0.0
    %1019 = vmatprep.subr.mxu0 0.0
    %1020 = vmatpush1.msra.mxu0 0.0
    %1021 = vmatprep.subr.mxu0 0.0
    %1022 = vmatpush1.msra.mxu0 0.0
    %1023 = vmatprep.subr.mxu0 0.0
    %1024 = vmatpush1.msra.mxu0 0.0
    %1025 = vmatprep.subr.mxu0 0.0
    %1026 = vmatpush1.msra.mxu0 0.0
    %1027 = vmatprep.subr.mxu0 0.0
    %1028 = vmatpush1.msra.mxu0 0.0
    %1029 = vmatprep.subr.mxu0 0.0
    %1030 = vmatpush1.msra.mxu0 0.0
    %1031 = vmatprep.subr.mxu0 0.0
    %1032 = vmatpush1.msra.mxu0 0.0
    %1033 = vmatprep.subr.mxu0 0.0
    %1034 = vmatpush1.msra.mxu0 0.0
    %1035 = vmatprep.subr.mxu0 0.0
    %1036 = vmatpush1.msra.mxu0 0.0
    %1037 = vmatprep.subr.mxu0 0.0
    %1038 = vmatpush1.msra.mxu0 0.0
    %1039 = vmatprep.subr.mxu0 0.0
    %1040 = vmatpush1.msra.mxu0 0.0
    %1041 = vmatprep.subr.mxu0 0.0
    %1042 = vmatpush1.msra.mxu0 0.0
    %1043 = vmatprep.subr.mxu0 0.0
    %1044 = vmatpush1.msra.mxu0 0.0
    %1045 = vmatprep.subr.mxu0 0.0
    %1046 = vmatpush1.msra.mxu0 0.0
    %1047 = vmatprep.subr.mxu0 0.0
    %1048 = vmatpush1.msra.mxu0 0.0
    %1049 = vmatprep.subr.mxu0 0.0
    %1050 = vmatpush1.msra.mxu0 0.0
    %1051 = vmatprep.subr.mxu0 0.0
    %1052 = vmatpush1.msra.mxu0 0.0
    %1053 = vmatprep.subr.mxu0 0.0
    %1054 = vmatpush1.msra.mxu0 0.0
    %1055 = vmatprep.subr.mxu0 0.0
    %1056 = vmatpush1.msra.mxu0 0.0
    %1057 = vmatprep.subr.mxu0 0.0
    %1058 = vmatpush1.msra.mxu0 0.0
    %1059 = vmatprep.subr.mxu0 0.0
    %1060 = vmatpush1.msra.mxu0 0.0
    %1061 = vmatprep.subr.mxu0 0.0
    %1062 = vmatpush1.msra.mxu0 0.0
    %1063 = vmatprep.subr.mxu0 0.0
    %1064 = vmatpush1.msra.mxu0 0.0
    %1065 = vmatprep.mubr.f32.mxu0 0.0
    %1066 = vmatmul.mubr.f32.gmra.mrb[0].mxu0 %v999
    %v1067 = vpop.f32.mrb[0].mxu0
    %v1068 = vadd.f32 0.0, %v1067
    %v1069 = vpop.f32.mrb[0].mxu0
    %1070 = vdwg.mxu0
    %1071 = vst.msk [vmem:[#allocation2 + $0x8] sm:$0xff] %vm222, %v1068
    %1072 = vrot.lane.b32.xlu0 %v218, 120
    %v1073 = vpop.permute.xlu0 %1072
    %1074 = vrot.lane.b32.xlu0 %v214, 88
    %v1075 = vpop.permute.xlu0 %1074
    %v1076 = vsel %vm222, %v1073, 0
    %v1078 = vsel %vm222, %v1075, 0
    %1080 = vmatprep.subr.mxu0 0.0
    %1081 = vmatpush1.xpose.msra.mxu0 %v1078
    %1082 = vmatprep.subr.mxu0 0.0
    %1083 = vmatpush1.xpose.msra.mxu0 0.0
    %1084 = vmatprep.subr.mxu0 0.0
    %1085 = vmatpush1.xpose.msra.mxu0 0.0
    %1086 = vmatprep.subr.mxu0 0.0
    %1087 = vmatpush1.xpose.msra.mxu0 0.0
    %1088 = vmatprep.subr.mxu0 0.0
    %1089 = vmatpush1.xpose.msra.mxu0 0.0
    %1090 = vmatprep.subr.mxu0 0.0
    %1091 = vmatpush1.xpose.msra.mxu0 0.0
    %1092 = vmatprep.subr.mxu0 0.0
    %1093 = vmatpush1.xpose.msra.mxu0 0.0
    %1094 = vmatprep.subr.mxu0 0.0
    %1095 = vmatpush1.xpose.msra.mxu0 0.0
    %1096 = vmatprep.subr.mxu0 0.0
    %1097 = vmatpush1.xpose.msra.mxu0 0.0
    %1098 = vmatprep.subr.mxu0 0.0
    %1099 = vmatpush1.xpose.msra.mxu0 0.0
    %1100 = vmatprep.subr.mxu0 0.0
    %1101 = vmatpush1.xpose.msra.mxu0 0.0
    %1102 = vmatprep.subr.mxu0 0.0
    %1103 = vmatpush1.xpose.msra.mxu0 0.0
    %1104 = vmatprep.subr.mxu0 0.0
    %1105 = vmatpush1.xpose.msra.mxu0 0.0
    %1106 = vmatprep.subr.mxu0 0.0
    %1107 = vmatpush1.xpose.msra.mxu0 0.0
    %1108 = vmatprep.subr.mxu0 0.0
    %1109 = vmatpush1.xpose.msra.mxu0 0.0
    %1110 = vmatprep.subr.mxu0 0.0
    %1111 = vmatpush1.xpose.msra.mxu0 0.0
    %1112 = vmatprep.subr.mxu0 0.0
    %1113 = vmatpush1.xpose.msra.mxu0 0.0
    %1114 = vmatprep.subr.mxu0 0.0
    %1115 = vmatpush1.xpose.msra.mxu0 0.0
    %1116 = vmatprep.subr.mxu0 0.0
    %1117 = vmatpush1.xpose.msra.mxu0 0.0
    %1118 = vmatprep.subr.mxu0 0.0
    %1119 = vmatpush1.xpose.msra.mxu0 0.0
    %1120 = vmatprep.subr.mxu0 0.0
    %1121 = vmatpush1.xpose.msra.mxu0 0.0
    %1122 = vmatprep.subr.mxu0 0.0
    %1123 = vmatpush1.xpose.msra.mxu0 0.0
    %1124 = vmatprep.subr.mxu0 0.0
    %1125 = vmatpush1.xpose.msra.mxu0 0.0
    %1126 = vmatprep.subr.mxu0 0.0
    %1127 = vmatpush1.xpose.msra.mxu0 0.0
    %1128 = vmatprep.subr.mxu0 0.0
    %1129 = vmatpush1.xpose.msra.mxu0 0.0
    %1130 = vmatprep.subr.mxu0 0.0
    %1131 = vmatpush1.xpose.msra.mxu0 0.0
    %1132 = vmatprep.subr.mxu0 0.0
    %1133 = vmatpush1.xpose.msra.mxu0 0.0
    %1134 = vmatprep.subr.mxu0 0.0
    %1135 = vmatpush1.xpose.msra.mxu0 0.0
    %1136 = vmatprep.subr.mxu0 0.0
    %1137 = vmatpush1.xpose.msra.mxu0 0.0
    %1138 = vmatprep.subr.mxu0 0.0
    %1139 = vmatpush1.xpose.msra.mxu0 0.0
    %1140 = vmatprep.subr.mxu0 0.0
    %1141 = vmatpush1.xpose.msra.mxu0 0.0
    %1142 = vmatprep.subr.mxu0 0.0
    %1143 = vmatpush1.xpose.msra.mxu0 0.0
    %1144 = vmatprep.mubr.f32.mxu0 0.0
    %1145 = vmatmul.mubr.f32.gmra.mrb[0].mxu0 %v1076
    %v1146 = vpop.f32.mrb[0].mxu0
    %v1147 = vadd.f32 0.0, %v1146
    %v1148 = vpop.f32.mrb[0].mxu0
    %1149 = vdwg.mxu0
    %v1150 = vsel %vm222, %v1147, -inf
    %1151 = vmax.xlane.f32.xlu0 %v1150
    %v1152 = vpop.xlane.xlu0 %1151
    %v1153 = vsub.f32 %v1147, %v1152
    %v1154 = vmul.f32 %v1153, 1.442695
    %v1155 = vpow.pop %v1154
    %v1156 = vsel %vm222, %v1155, 0.0
    %1157 = vadd.xlane.f32.xlu0 %v1156
    %v1158 = vpop.xlane.xlu0 %1157
    %v1159 = vrcp.pop %v1158
    %v1160 = vmul.f32 %v1155, %v1159
    %v1161 = vadd.f32 %v994, %v1160
    %1162 = vrot.lane.b32.xlu0 %v214, 56
    %v1163 = vpop.permute.xlu0 %1162
    %v1166 = vsel %vm222, %v1160, 0
    %1168 = vmatprep.subr.mxu0 0.0
    %1169 = vmatpush1.msra.mxu0 %v1163
    %1170 = vmatprep.subr.mxu0 0.0
    %1171 = vmatpush1.msra.mxu0 0.0
    %1172 = vmatprep.subr.mxu0 0.0
    %1173 = vmatpush1.msra.mxu0 0.0
    %1174 = vmatprep.subr.mxu0 0.0
    %1175 = vmatpush1.msra.mxu0 0.0
    %1176 = vmatprep.subr.mxu0 0.0
    %1177 = vmatpush1.msra.mxu0 0.0
    %1178 = vmatprep.subr.mxu0 0.0
    %1179 = vmatpush1.msra.mxu0 0.0
    %1180 = vmatprep.subr.mxu0 0.0
    %1181 = vmatpush1.msra.mxu0 0.0
    %1182 = vmatprep.subr.mxu0 0.0
    %1183 = vmatpush1.msra.mxu0 0.0
    %1184 = vmatprep.subr.mxu0 0.0
    %1185 = vmatpush1.msra.mxu0 0.0
    %1186 = vmatprep.subr.mxu0 0.0
    %1187 = vmatpush1.msra.mxu0 0.0
    %1188 = vmatprep.subr.mxu0 0.0
    %1189 = vmatpush1.msra.mxu0 0.0
    %1190 = vmatprep.subr.mxu0 0.0
    %1191 = vmatpush1.msra.mxu0 0.0
    %1192 = vmatprep.subr.mxu0 0.0
    %1193 = vmatpush1.msra.mxu0 0.0
    %1194 = vmatprep.subr.mxu0 0.0
    %1195 = vmatpush1.msra.mxu0 0.0
    %1196 = vmatprep.subr.mxu0 0.0
    %1197 = vmatpush1.msra.mxu0 0.0
    %1198 = vmatprep.subr.mxu0 0.0
    %1199 = vmatpush1.msra.mxu0 0.0
    %1200 = vmatprep.subr.mxu0 0.0
    %1201 = vmatpush1.msra.mxu0 0.0
    %1202 = vmatprep.subr.mxu0 0.0
    %1203 = vmatpush1.msra.mxu0 0.0
    %1204 = vmatprep.subr.mxu0 0.0
    %1205 = vmatpush1.msra.mxu0 0.0
    %1206 = vmatprep.subr.mxu0 0.0
    %1207 = vmatpush1.msra.mxu0 0.0
    %1208 = vmatprep.subr.mxu0 0.0
    %1209 = vmatpush1.msra.mxu0 0.0
    %1210 = vmatprep.subr.mxu0 0.0
    %1211 = vmatpush1.msra.mxu0 0.0
    %1212 = vmatprep.subr.mxu0 0.0
    %1213 = vmatpush1.msra.mxu0 0.0
    %1214 = vmatprep.subr.mxu0 0.0
    %1215 = vmatpush1.msra.mxu0 0.0
    %1216 = vmatprep.subr.mxu0 0.0
    %1217 = vmatpush1.msra.mxu0 0.0
    %1218 = vmatprep.subr.mxu0 0.0
    %1219 = vmatpush1.msra.mxu0 0.0
    %1220 = vmatprep.subr.mxu0 0.0
    %1221 = vmatpush1.msra.mxu0 0.0
    %1222 = vmatprep.subr.mxu0 0.0
    %1223 = vmatpush1.msra.mxu0 0.0
    %1224 = vmatprep.subr.mxu0 0.0
    %1225 = vmatpush1.msra.mxu0 0.0
    %1226 = vmatprep.subr.mxu0 0.0
    %1227 = vmatpush1.msra.mxu0 0.0
    %1228 = vmatprep.subr.mxu0 0.0
    %1229 = vmatpush1.msra.mxu0 0.0
    %1230 = vmatprep.subr.mxu0 0.0
    %1231 = vmatpush1.msra.mxu0 0.0
    %1232 = vmatprep.mubr.f32.mxu0 0.0
    %1233 = vmatmul.mubr.f32.gmra.mrb[0].mxu0 %v1166
    %v1234 = vpop.f32.mrb[0].mxu0
    %v1235 = vadd.f32 0.0, %v1234
    %v1236 = vpop.f32.mrb[0].mxu0
    %1237 = vdwg.mxu0
    %1239 = vrot.lane.b32.xlu0 %v1235, 8
    %v1240 = vpop.permute.xlu0 %1239
    %1242 = vst.msk [vmem:[#allocation2 + $0x8] sm:$0xff] %vm557, %v1240
    %1243 = vrot.lane.b32.xlu0 %v218, 112
    %v1244 = vpop.permute.xlu0 %1243
    %1245 = vrot.lane.b32.xlu0 %v214, 80
    %v1246 = vpop.permute.xlu0 %1245
    %v1247 = vsel %vm222, %v1244, 0
    %v1249 = vsel %vm222, %v1246, 0
    %1251 = vmatprep.subr.mxu0 0.0
    %1252 = vmatpush1.xpose.msra.mxu0 %v1249
    %1253 = vmatprep.subr.mxu0 0.0
    %1254 = vmatpush1.xpose.msra.mxu0 0.0
    %1255 = vmatprep.subr.mxu0 0.0
    %1256 = vmatpush1.xpose.msra.mxu0 0.0
    %1257 = vmatprep.subr.mxu0 0.0
    %1258 = vmatpush1.xpose.msra.mxu0 0.0
    %1259 = vmatprep.subr.mxu0 0.0
    %1260 = vmatpush1.xpose.msra.mxu0 0.0
    %1261 = vmatprep.subr.mxu0 0.0
    %1262 = vmatpush1.xpose.msra.mxu0 0.0
    %1263 = vmatprep.subr.mxu0 0.0
    %1264 = vmatpush1.xpose.msra.mxu0 0.0
    %1265 = vmatprep.subr.mxu0 0.0
    %1266 = vmatpush1.xpose.msra.mxu0 0.0
    %1267 = vmatprep.subr.mxu0 0.0
    %1268 = vmatpush1.xpose.msra.mxu0 0.0
    %1269 = vmatprep.subr.mxu0 0.0
    %1270 = vmatpush1.xpose.msra.mxu0 0.0
    %1271 = vmatprep.subr.mxu0 0.0
    %1272 = vmatpush1.xpose.msra.mxu0 0.0
    %1273 = vmatprep.subr.mxu0 0.0
    %1274 = vmatpush1.xpose.msra.mxu0 0.0
    %1275 = vmatprep.subr.mxu0 0.0
    %1276 = vmatpush1.xpose.msra.mxu0 0.0
    %1277 = vmatprep.subr.mxu0 0.0
    %1278 = vmatpush1.xpose.msra.mxu0 0.0
    %1279 = vmatprep.subr.mxu0 0.0
    %1280 = vmatpush1.xpose.msra.mxu0 0.0
    %1281 = vmatprep.subr.mxu0 0.0
    %1282 = vmatpush1.xpose.msra.mxu0 0.0
    %1283 = vmatprep.subr.mxu0 0.0
    %1284 = vmatpush1.xpose.msra.mxu0 0.0
    %1285 = vmatprep.subr.mxu0 0.0
    %1286 = vmatpush1.xpose.msra.mxu0 0.0
    %1287 = vmatprep.subr.mxu0 0.0
    %1288 = vmatpush1.xpose.msra.mxu0 0.0
    %1289 = vmatprep.subr.mxu0 0.0
    %1290 = vmatpush1.xpose.msra.mxu0 0.0
    %1291 = vmatprep.subr.mxu0 0.0
    %1292 = vmatpush1.xpose.msra.mxu0 0.0
    %1293 = vmatprep.subr.mxu0 0.0
    %1294 = vmatpush1.xpose.msra.mxu0 0.0
    %1295 = vmatprep.subr.mxu0 0.0
    %1296 = vmatpush1.xpose.msra.mxu0 0.0
    %1297 = vmatprep.subr.mxu0 0.0
    %1298 = vmatpush1.xpose.msra.mxu0 0.0
    %1299 = vmatprep.subr.mxu0 0.0
    %1300 = vmatpush1.xpose.msra.mxu0 0.0
    %1301 = vmatprep.subr.mxu0 0.0
    %1302 = vmatpush1.xpose.msra.mxu0 0.0
    %1303 = vmatprep.subr.mxu0 0.0
    %1304 = vmatpush1.xpose.msra.mxu0 0.0
    %1305 = vmatprep.subr.mxu0 0.0
    %1306 = vmatpush1.xpose.msra.mxu0 0.0
    %1307 = vmatprep.subr.mxu0 0.0
    %1308 = vmatpush1.xpose.msra.mxu0 0.0
    %1309 = vmatprep.subr.mxu0 0.0
    %1310 = vmatpush1.xpose.msra.mxu0 0.0
    %1311 = vmatprep.subr.mxu0 0.0
    %1312 = vmatpush1.xpose.msra.mxu0 0.0
    %1313 = vmatprep.subr.mxu0 0.0
    %1314 = vmatpush1.xpose.msra.mxu0 0.0
    %1315 = vmatprep.mubr.f32.mxu0 0.0
    %1316 = vmatmul.mubr.f32.gmra.mrb[0].mxu0 %v1247
    %v1317 = vpop.f32.mrb[0].mxu0
    %v1318 = vadd.f32 0.0, %v1317
    %v1319 = vpop.f32.mrb[0].mxu0
    %1320 = vdwg.mxu0
    %v1321 = vsel %vm222, %v1318, -inf
    %1322 = vmax.xlane.f32.xlu0 %v1321
    %v1323 = vpop.xlane.xlu0 %1322
    %v1324 = vsub.f32 %v1318, %v1323
    %v1325 = vmul.f32 %v1324, 1.442695
    %v1326 = vpow.pop %v1325
    %v1327 = vsel %vm222, %v1326, 0.0
    %1328 = vadd.xlane.f32.xlu0 %v1327
    %v1329 = vpop.xlane.xlu0 %1328
    %v1330 = vrcp.pop %v1329
    %v1331 = vmul.f32 %v1326, %v1330
    %v1332 = vadd.f32 %v1161, %v1331
    %1333 = vrot.lane.b32.xlu0 %v214, 48
    %v1334 = vpop.permute.xlu0 %1333
    %v1337 = vsel %vm222, %v1331, 0
    %1339 = vmatprep.subr.mxu0 0.0
    %1340 = vmatpush1.msra.mxu0 %v1334
    %1341 = vmatprep.subr.mxu0 0.0
    %1342 = vmatpush1.msra.mxu0 0.0
    %1343 = vmatprep.subr.mxu0 0.0
    %1344 = vmatpush1.msra.mxu0 0.0
    %1345 = vmatprep.subr.mxu0 0.0
    %1346 = vmatpush1.msra.mxu0 0.0
    %1347 = vmatprep.subr.mxu0 0.0
    %1348 = vmatpush1.msra.mxu0 0.0
    %1349 = vmatprep.subr.mxu0 0.0
    %1350 = vmatpush1.msra.mxu0 0.0
    %1351 = vmatprep.subr.mxu0 0.0
    %1352 = vmatpush1.msra.mxu0 0.0
    %1353 = vmatprep.subr.mxu0 0.0
    %1354 = vmatpush1.msra.mxu0 0.0
    %1355 = vmatprep.subr.mxu0 0.0
    %1356 = vmatpush1.msra.mxu0 0.0
    %1357 = vmatprep.subr.mxu0 0.0
    %1358 = vmatpush1.msra.mxu0 0.0
    %1359 = vmatprep.subr.mxu0 0.0
    %1360 = vmatpush1.msra.mxu0 0.0
    %1361 = vmatprep.subr.mxu0 0.0
    %1362 = vmatpush1.msra.mxu0 0.0
    %1363 = vmatprep.subr.mxu0 0.0
    %1364 = vmatpush1.msra.mxu0 0.0
    %1365 = vmatprep.subr.mxu0 0.0
    %1366 = vmatpush1.msra.mxu0 0.0
    %1367 = vmatprep.subr.mxu0 0.0
    %1368 = vmatpush1.msra.mxu0 0.0
    %1369 = vmatprep.subr.mxu0 0.0
    %1370 = vmatpush1.msra.mxu0 0.0
    %1371 = vmatprep.subr.mxu0 0.0
    %1372 = vmatpush1.msra.mxu0 0.0
    %1373 = vmatprep.subr.mxu0 0.0
    %1374 = vmatpush1.msra.mxu0 0.0
    %1375 = vmatprep.subr.mxu0 0.0
    %1376 = vmatpush1.msra.mxu0 0.0
    %1377 = vmatprep.subr.mxu0 0.0
    %1378 = vmatpush1.msra.mxu0 0.0
    %1379 = vmatprep.subr.mxu0 0.0
    %1380 = vmatpush1.msra.mxu0 0.0
    %1381 = vmatprep.subr.mxu0 0.0
    %1382 = vmatpush1.msra.mxu0 0.0
    %1383 = vmatprep.subr.mxu0 0.0
    %1384 = vmatpush1.msra.mxu0 0.0
    %1385 = vmatprep.subr.mxu0 0.0
    %1386 = vmatpush1.msra.mxu0 0.0
    %1387 = vmatprep.subr.mxu0 0.0
    %1388 = vmatpush1.msra.mxu0 0.0
    %1389 = vmatprep.subr.mxu0 0.0
    %1390 = vmatpush1.msra.mxu0 0.0
    %1391 = vmatprep.subr.mxu0 0.0
    %1392 = vmatpush1.msra.mxu0 0.0
    %1393 = vmatprep.subr.mxu0 0.0
    %1394 = vmatpush1.msra.mxu0 0.0
    %1395 = vmatprep.subr.mxu0 0.0
    %1396 = vmatpush1.msra.mxu0 0.0
    %1397 = vmatprep.subr.mxu0 0.0
    %1398 = vmatpush1.msra.mxu0 0.0
    %1399 = vmatprep.subr.mxu0 0.0
    %1400 = vmatpush1.msra.mxu0 0.0
    %1401 = vmatprep.subr.mxu0 0.0
    %1402 = vmatpush1.msra.mxu0 0.0
    %1403 = vmatprep.mubr.f32.mxu0 0.0
    %1404 = vmatmul.mubr.f32.gmra.mrb[0].mxu0 %v1337
    %v1405 = vpop.f32.mrb[0].mxu0
    %v1406 = vadd.f32 0.0, %v1405
    %v1407 = vpop.f32.mrb[0].mxu0
    %1408 = vdwg.mxu0
    %1410 = vrot.lane.b32.xlu0 %v1406, 16
    %v1411 = vpop.permute.xlu0 %1410
    %1413 = vst.msk [vmem:[#allocation2 + $0x8] sm:$0xff] %vm729, %v1411
    %1414 = vrot.lane.b32.xlu0 %v218, 104
    %v1415 = vpop.permute.xlu0 %1414
    %1416 = vrot.lane.b32.xlu0 %v214, 72
    %v1417 = vpop.permute.xlu0 %1416
    %v1418 = vsel %vm222, %v1415, 0
    %v1420 = vsel %vm222, %v1417, 0
    %1422 = vmatprep.subr.mxu0 0.0
    %1423 = vmatpush1.xpose.msra.mxu0 %v1420
    %1424 = vmatprep.subr.mxu0 0.0
    %1425 = vmatpush1.xpose.msra.mxu0 0.0
    %1426 = vmatprep.subr.mxu0 0.0
    %1427 = vmatpush1.xpose.msra.mxu0 0.0
    %1428 = vmatprep.subr.mxu0 0.0
    %1429 = vmatpush1.xpose.msra.mxu0 0.0
    %1430 = vmatprep.subr.mxu0 0.0
    %1431 = vmatpush1.xpose.msra.mxu0 0.0
    %1432 = vmatprep.subr.mxu0 0.0
    %1433 = vmatpush1.xpose.msra.mxu0 0.0
    %1434 = vmatprep.subr.mxu0 0.0
    %1435 = vmatpush1.xpose.msra.mxu0 0.0
    %1436 = vmatprep.subr.mxu0 0.0
    %1437 = vmatpush1.xpose.msra.mxu0 0.0
    %1438 = vmatprep.subr.mxu0 0.0
    %1439 = vmatpush1.xpose.msra.mxu0 0.0
    %1440 = vmatprep.subr.mxu0 0.0
    %1441 = vmatpush1.xpose.msra.mxu0 0.0
    %1442 = vmatprep.subr.mxu0 0.0
    %1443 = vmatpush1.xpose.msra.mxu0 0.0
    %1444 = vmatprep.subr.mxu0 0.0
    %1445 = vmatpush1.xpose.msra.mxu0 0.0
    %1446 = vmatprep.subr.mxu0 0.0
    %1447 = vmatpush1.xpose.msra.mxu0 0.0
    %1448 = vmatprep.subr.mxu0 0.0
    %1449 = vmatpush1.xpose.msra.mxu0 0.0
    %1450 = vmatprep.subr.mxu0 0.0
    %1451 = vmatpush1.xpose.msra.mxu0 0.0
    %1452 = vmatprep.subr.mxu0 0.0
    %1453 = vmatpush1.xpose.msra.mxu0 0.0
    %1454 = vmatprep.subr.mxu0 0.0
    %1455 = vmatpush1.xpose.msra.mxu0 0.0
    %1456 = vmatprep.subr.mxu0 0.0
    %1457 = vmatpush1.xpose.msra.mxu0 0.0
    %1458 = vmatprep.subr.mxu0 0.0
    %1459 = vmatpush1.xpose.msra.mxu0 0.0
    %1460 = vmatprep.subr.mxu0 0.0
    %1461 = vmatpush1.xpose.msra.mxu0 0.0
    %1462 = vmatprep.subr.mxu0 0.0
    %1463 = vmatpush1.xpose.msra.mxu0 0.0
    %1464 = vmatprep.subr.mxu0 0.0
    %1465 = vmatpush1.xpose.msra.mxu0 0.0
    %1466 = vmatprep.subr.mxu0 0.0
    %1467 = vmatpush1.xpose.msra.mxu0 0.0
    %1468 = vmatprep.subr.mxu0 0.0
    %1469 = vmatpush1.xpose.msra.mxu0 0.0
    %1470 = vmatprep.subr.mxu0 0.0
    %1471 = vmatpush1.xpose.msra.mxu0 0.0
    %1472 = vmatprep.subr.mxu0 0.0
    %1473 = vmatpush1.xpose.msra.mxu0 0.0
    %1474 = vmatprep.subr.mxu0 0.0
    %1475 = vmatpush1.xpose.msra.mxu0 0.0
    %1476 = vmatprep.subr.mxu0 0.0
    %1477 = vmatpush1.xpose.msra.mxu0 0.0
    %1478 = vmatprep.subr.mxu0 0.0
    %1479 = vmatpush1.xpose.msra.mxu0 0.0
    %1480 = vmatprep.subr.mxu0 0.0
    %1481 = vmatpush1.xpose.msra.mxu0 0.0
    %1482 = vmatprep.subr.mxu0 0.0
    %1483 = vmatpush1.xpose.msra.mxu0 0.0
    %1484 = vmatprep.subr.mxu0 0.0
    %1485 = vmatpush1.xpose.msra.mxu0 0.0
    %1486 = vmatprep.mubr.f32.mxu0 0.0
    %1487 = vmatmul.mubr.f32.gmra.mrb[0].mxu0 %v1418
    %v1488 = vpop.f32.mrb[0].mxu0
    %v1489 = vadd.f32 0.0, %v1488
    %v1490 = vpop.f32.mrb[0].mxu0
    %1491 = vdwg.mxu0
    %v1492 = vsel %vm222, %v1489, -inf
    %1493 = vmax.xlane.f32.xlu0 %v1492
    %v1494 = vpop.xlane.xlu0 %1493
    %v1495 = vsub.f32 %v1489, %v1494
    %v1496 = vmul.f32 %v1495, 1.442695
    %v1497 = vpow.pop %v1496
    %v1498 = vsel %vm222, %v1497, 0.0
    %1499 = vadd.xlane.f32.xlu0 %v1498
    %v1500 = vpop.xlane.xlu0 %1499
    %v1501 = vrcp.pop %v1500
    %v1502 = vmul.f32 %v1497, %v1501
    %v1503 = vadd.f32 %v1332, %v1502
    %1504 = vrot.lane.b32.xlu0 %v214, 40
    %v1505 = vpop.permute.xlu0 %1504
    %v1508 = vsel %vm222, %v1502, 0
    %1510 = vmatprep.subr.mxu0 0.0
    %1511 = vmatpush1.msra.mxu0 %v1505
    %1512 = vmatprep.subr.mxu0 0.0
    %1513 = vmatpush1.msra.mxu0 0.0
    %1514 = vmatprep.subr.mxu0 0.0
    %1515 = vmatpush1.msra.mxu0 0.0
    %1516 = vmatprep.subr.mxu0 0.0
    %1517 = vmatpush1.msra.mxu0 0.0
    %1518 = vmatprep.subr.mxu0 0.0
    %1519 = vmatpush1.msra.mxu0 0.0
    %1520 = vmatprep.subr.mxu0 0.0
    %1521 = vmatpush1.msra.mxu0 0.0
    %1522 = vmatprep.subr.mxu0 0.0
    %1523 = vmatpush1.msra.mxu0 0.0
    %1524 = vmatprep.subr.mxu0 0.0
    %1525 = vmatpush1.msra.mxu0 0.0
    %1526 = vmatprep.subr.mxu0 0.0
    %1527 = vmatpush1.msra.mxu0 0.0
    %1528 = vmatprep.subr.mxu0 0.0
    %1529 = vmatpush1.msra.mxu0 0.0
    %1530 = vmatprep.subr.mxu0 0.0
    %1531 = vmatpush1.msra.mxu0 0.0
    %1532 = vmatprep.subr.mxu0 0.0
    %1533 = vmatpush1.msra.mxu0 0.0
    %1534 = vmatprep.subr.mxu0 0.0
    %1535 = vmatpush1.msra.mxu0 0.0
    %1536 = vmatprep.subr.mxu0 0.0
    %1537 = vmatpush1.msra.mxu0 0.0
    %1538 = vmatprep.subr.mxu0 0.0
    %1539 = vmatpush1.msra.mxu0 0.0
    %1540 = vmatprep.subr.mxu0 0.0
    %1541 = vmatpush1.msra.mxu0 0.0
    %1542 = vmatprep.subr.mxu0 0.0
    %1543 = vmatpush1.msra.mxu0 0.0
    %1544 = vmatprep.subr.mxu0 0.0
    %1545 = vmatpush1.msra.mxu0 0.0
    %1546 = vmatprep.subr.mxu0 0.0
    %1547 = vmatpush1.msra.mxu0 0.0
    %1548 = vmatprep.subr.mxu0 0.0
    %1549 = vmatpush1.msra.mxu0 0.0
    %1550 = vmatprep.subr.mxu0 0.0
    %1551 = vmatpush1.msra.mxu0 0.0
    %1552 = vmatprep.subr.mxu0 0.0
    %1553 = vmatpush1.msra.mxu0 0.0
    %1554 = vmatprep.subr.mxu0 0.0
    %1555 = vmatpush1.msra.mxu0 0.0
    %1556 = vmatprep.subr.mxu0 0.0
    %1557 = vmatpush1.msra.mxu0 0.0
    %1558 = vmatprep.subr.mxu0 0.0
    %1559 = vmatpush1.msra.mxu0 0.0
    %1560 = vmatprep.subr.mxu0 0.0
    %1561 = vmatpush1.msra.mxu0 0.0
    %1562 = vmatprep.subr.mxu0 0.0
    %1563 = vmatpush1.msra.mxu0 0.0
    %1564 = vmatprep.subr.mxu0 0.0
    %1565 = vmatpush1.msra.mxu0 0.0
    %1566 = vmatprep.subr.mxu0 0.0
    %1567 = vmatpush1.msra.mxu0 0.0
    %1568 = vmatprep.subr.mxu0 0.0
    %1569 = vmatpush1.msra.mxu0 0.0
    %1570 = vmatprep.subr.mxu0 0.0
    %1571 = vmatpush1.msra.mxu0 0.0
    %1572 = vmatprep.subr.mxu0 0.0
    %1573 = vmatpush1.msra.mxu0 0.0
    %1574 = vmatprep.mubr.f32.mxu0 0.0
    %1575 = vmatmul.mubr.f32.gmra.mrb[0].mxu0 %v1508
    %v1576 = vpop.f32.mrb[0].mxu0
    %v1577 = vadd.f32 0.0, %v1576
    %v1578 = vpop.f32.mrb[0].mxu0
    %1579 = vdwg.mxu0
    %1581 = vrot.lane.b32.xlu0 %v1577, 24
    %v1582 = vpop.permute.xlu0 %1581
    %1584 = vst.msk [vmem:[#allocation2 + $0x8] sm:$0xff] %vm901, %v1582
    %v1585 = vmul.f32 %v1503, 0.25
    %s1586 = scalar_lea.vmem [#allocation16], 8
    %1587 = vst.msk [vmem:[%s1586] sm:$0xff] %vm222, %v1585
    %v1588 = vld [vmem:[#allocation2] sm:$0xff]
    %v1589 = vld [vmem:[#allocation2 + $0x8] sm:$0xff]
    %v1590 = vld [vmem:[#allocation10] sm:$0xff]
    %v1591 = vld [vmem:[#allocation10 + $0x8] sm:$0xff]
    %v1592 = vld [vmem:[#allocation10 + $0x10] sm:$0xff]
    %v1593 = vld [vmem:[#allocation10 + $0x18] sm:$0xff]
    %v1594 = vlaneseq
    %v1595 = vshrl.u32 %v1594, 7
    %v1596 = vsub.s32 0, %v1595
    %v1597 = vrot.slane %v115, %v1596
    %v1599 = vsel %vm135, %v1588, 0
    %v1602 = vsel %vm135, %v1589, 0
    %1604 = vmatprep.subr.mxu0 0.0
    %1605 = vmatpush1.msra.mxu0 %v1590
    %1606 = vmatprep.subr.mxu0 0.0
    %1607 = vmatpush1.msra.mxu0 %v1591
    %1608 = vmatprep.subr.mxu0 0.0
    %1609 = vmatpush1.msra.mxu0 %v1592
    %1610 = vmatprep.subr.mxu0 0.0
    %1611 = vmatpush1.msra.mxu0 %v1593
    %1612 = vmatprep.subr.mxu0 0.0
    %1613 = vmatpush1.msra.mxu0 0.0
    %1614 = vmatprep.subr.mxu0 0.0
    %1615 = vmatpush1.msra.mxu0 0.0
    %1616 = vmatprep.subr.mxu0 0.0
    %1617 = vmatpush1.msra.mxu0 0.0
    %1618 = vmatprep.subr.mxu0 0.0
    %1619 = vmatpush1.msra.mxu0 0.0
    %1620 = vmatprep.subr.mxu0 0.0
    %1621 = vmatpush1.msra.mxu0 0.0
    %1622 = vmatprep.subr.mxu0 0.0
    %1623 = vmatpush1.msra.mxu0 0.0
    %1624 = vmatprep.subr.mxu0 0.0
    %1625 = vmatpush1.msra.mxu0 0.0
    %1626 = vmatprep.subr.mxu0 0.0
    %1627 = vmatpush1.msra.mxu0 0.0
    %1628 = vmatprep.subr.mxu0 0.0
    %1629 = vmatpush1.msra.mxu0 0.0
    %1630 = vmatprep.subr.mxu0 0.0
    %1631 = vmatpush1.msra.mxu0 0.0
    %1632 = vmatprep.subr.mxu0 0.0
    %1633 = vmatpush1.msra.mxu0 0.0
    %1634 = vmatprep.subr.mxu0 0.0
    %1635 = vmatpush1.msra.mxu0 0.0
    %1636 = vmatprep.subr.mxu0 0.0
    %1637 = vmatpush1.msra.mxu0 0.0
    %1638 = vmatprep.subr.mxu0 0.0
    %1639 = vmatpush1.msra.mxu0 0.0
    %1640 = vmatprep.subr.mxu0 0.0
    %1641 = vmatpush1.msra.mxu0 0.0
    %1642 = vmatprep.subr.mxu0 0.0
    %1643 = vmatpush1.msra.mxu0 0.0
    %1644 = vmatprep.subr.mxu0 0.0
    %1645 = vmatpush1.msra.mxu0 0.0
    %1646 = vmatprep.subr.mxu0 0.0
    %1647 = vmatpush1.msra.mxu0 0.0
    %1648 = vmatprep.subr.mxu0 0.0
    %1649 = vmatpush1.msra.mxu0 0.0
    %1650 = vmatprep.subr.mxu0 0.0
    %1651 = vmatpush1.msra.mxu0 0.0
    %1652 = vmatprep.subr.mxu0 0.0
    %1653 = vmatpush1.msra.mxu0 0.0
    %1654 = vmatprep.subr.mxu0 0.0
    %1655 = vmatpush1.msra.mxu0 0.0
    %1656 = vmatprep.subr.mxu0 0.0
    %1657 = vmatpush1.msra.mxu0 0.0
    %1658 = vmatprep.subr.mxu0 0.0
    %1659 = vmatpush1.msra.mxu0 0.0
    %1660 = vmatprep.subr.mxu0 0.0
    %1661 = vmatpush1.msra.mxu0 0.0
    %1662 = vmatprep.subr.mxu0 0.0
    %1663 = vmatpush1.msra.mxu0 0.0
    %1664 = vmatprep.subr.mxu0 0.0
    %1665 = vmatpush1.msra.mxu0 0.0
    %1666 = vmatprep.subr.mxu0 0.0
    %1667 = vmatpush1.msra.mxu0 0.0
    %1668 = vmatprep.mubr.f32.mxu0 0.0
    %1669 = vmatmul.mubr.f32.gmra.mrb[0].mxu0 %v1599
    %v1670 = vpop.f32.mrb[0].mxu0
    %v1671 = vadd.f32 %v1597, %v1670
    %v1672 = vpop.f32.mrb[0].mxu0
    %1673 = vmatprep.mubr.f32.mxu0 0.0
    %1674 = vmatmul.mubr.f32.gmra.mrb[0].mxu0 %v1602
    %v1675 = vpop.f32.mrb[0].mxu0
    %v1676 = vadd.f32 %v1597, %v1675
    %v1677 = vpop.f32.mrb[0].mxu0
    %1678 = vdwg.mxu0
    %v1679 = vld [vmem:[#allocation7] sm:$0xff]
    %v1681 = vsel %vm222, %v1679, 0
    %1683 = vmatprep.subr.mxu0 0.0
    %1684 = vmatpush1.msra.mxu0 %v1671
    %1685 = vmatprep.subr.mxu0 0.0
    %1686 = vmatpush1.msra.mxu0 0.0
    %1687 = vmatprep.subr.mxu0 0.0
    %1688 = vmatpush1.msra.mxu0 0.0
    %1689 = vmatprep.subr.mxu0 0.0
    %1690 = vmatpush1.msra.mxu0 0.0
    %1691 = vmatprep.subr.mxu0 0.0
    %1692 = vmatpush1.msra.mxu0 0.0
    %1693 = vmatprep.subr.mxu0 0.0
    %1694 = vmatpush1.msra.mxu0 0.0
    %1695 = vmatprep.subr.mxu0 0.0
    %1696 = vmatpush1.msra.mxu0 0.0
    %1697 = vmatprep.subr.mxu0 0.0
    %1698 = vmatpush1.msra.mxu0 0.0
    %1699 = vmatprep.subr.mxu0 0.0
    %1700 = vmatpush1.msra.mxu0 0.0
    %1701 = vmatprep.subr.mxu0 0.0
    %1702 = vmatpush1.msra.mxu0 0.0
    %1703 = vmatprep.subr.mxu0 0.0
    %1704 = vmatpush1.msra.mxu0 0.0
    %1705 = vmatprep.subr.mxu0 0.0
    %1706 = vmatpush1.msra.mxu0 0.0
    %1707 = vmatprep.subr.mxu0 0.0
    %1708 = vmatpush1.msra.mxu0 0.0
    %1709 = vmatprep.subr.mxu0 0.0
    %1710 = vmatpush1.msra.mxu0 0.0
    %1711 = vmatprep.subr.mxu0 0.0
    %1712 = vmatpush1.msra.mxu0 0.0
    %1713 = vmatprep.subr.mxu0 0.0
    %1714 = vmatpush1.msra.mxu0 0.0
    %1715 = vmatprep.subr.mxu0 0.0
    %1716 = vmatpush1.msra.mxu0 0.0
    %1717 = vmatprep.subr.mxu0 0.0
    %1718 = vmatpush1.msra.mxu0 0.0
    %1719 = vmatprep.subr.mxu0 0.0
    %1720 = vmatpush1.msra.mxu0 0.0
    %1721 = vmatprep.subr.mxu0 0.0
    %1722 = vmatpush1.msra.mxu0 0.0
    %1723 = vmatprep.subr.mxu0 0.0
    %1724 = vmatpush1.msra.mxu0 0.0
    %1725 = vmatprep.subr.mxu0 0.0
    %1726 = vmatpush1.msra.mxu0 0.0
    %1727 = vmatprep.subr.mxu0 0.0
    %1728 = vmatpush1.msra.mxu0 0.0
    %1729 = vmatprep.subr.mxu0 0.0
    %1730 = vmatpush1.msra.mxu0 0.0
    %1731 = vmatprep.subr.mxu0 0.0
    %1732 = vmatpush1.msra.mxu0 0.0
    %1733 = vmatprep.subr.mxu0 0.0
    %1734 = vmatpush1.msra.mxu0 0.0
    %1735 = vmatprep.subr.mxu0 0.0
    %1736 = vmatpush1.msra.mxu0 0.0
    %1737 = vmatprep.subr.mxu0 0.0
    %1738 = vmatpush1.msra.mxu0 0.0
    %1739 = vmatprep.subr.mxu0 0.0
    %1740 = vmatpush1.msra.mxu0 0.0
    %1741 = vmatprep.subr.mxu0 0.0
    %1742 = vmatpush1.msra.mxu0 0.0
    %1743 = vmatprep.subr.mxu0 0.0
    %1744 = vmatpush1.msra.mxu0 0.0
    %1745 = vmatprep.subr.mxu0 0.0
    %1746 = vmatpush1.msra.mxu0 0.0
    %1747 = vmatprep.mubr.f32.mxu0 0.0
    %1748 = vmatmul.mubr.f32.gmra.mrb[0].mxu0 %v1681
    %v1749 = vpop.f32.mrb[0].mxu0
    %v1750 = vadd.f32 0.0, %v1749
    %v1751 = vpop.f32.mrb[0].mxu0
    %1752 = vdwg.mxu0
    %1753 = vst.msk [vmem:[#allocation3] sm:$0xff] %vm135, %v1750
    %s1754 = scalar_lea.vmem [#allocation7], 8
    %v1755 = vld [vmem:[%s1754] sm:$0xff]
    %v1757 = vsel %vm222, %v1755, 0
    %1759 = vmatprep.subr.mxu0 0.0
    %1760 = vmatpush1.msra.mxu0 %v1676
    %1761 = vmatprep.subr.mxu0 0.0
    %1762 = vmatpush1.msra.mxu0 0.0
    %1763 = vmatprep.subr.mxu0 0.0
    %1764 = vmatpush1.msra.mxu0 0.0
    %1765 = vmatprep.subr.mxu0 0.0
    %1766 = vmatpush1.msra.mxu0 0.0
    %1767 = vmatprep.subr.mxu0 0.0
    %1768 = vmatpush1.msra.mxu0 0.0
    %1769 = vmatprep.subr.mxu0 0.0
    %1770 = vmatpush1.msra.mxu0 0.0
    %1771 = vmatprep.subr.mxu0 0.0
    %1772 = vmatpush1.msra.mxu0 0.0
    %1773 = vmatprep.subr.mxu0 0.0
    %1774 = vmatpush1.msra.mxu0 0.0
    %1775 = vmatprep.subr.mxu0 0.0
    %1776 = vmatpush1.msra.mxu0 0.0
    %1777 = vmatprep.subr.mxu0 0.0
    %1778 = vmatpush1.msra.mxu0 0.0
    %1779 = vmatprep.subr.mxu0 0.0
    %1780 = vmatpush1.msra.mxu0 0.0
    %1781 = vmatprep.subr.mxu0 0.0
    %1782 = vmatpush1.msra.mxu0 0.0
    %1783 = vmatprep.subr.mxu0 0.0
    %1784 = vmatpush1.msra.mxu0 0.0
    %1785 = vmatprep.subr.mxu0 0.0
    %1786 = vmatpush1.msra.mxu0 0.0
    %1787 = vmatprep.subr.mxu0 0.0
    %1788 = vmatpush1.msra.mxu0 0.0
    %1789 = vmatprep.subr.mxu0 0.0
    %1790 = vmatpush1.msra.mxu0 0.0
    %1791 = vmatprep.subr.mxu0 0.0
    %1792 = vmatpush1.msra.mxu0 0.0
    %1793 = vmatprep.subr.mxu0 0.0
    %1794 = vmatpush1.msra.mxu0 0.0
    %1795 = vmatprep.subr.mxu0 0.0
    %1796 = vmatpush1.msra.mxu0 0.0
    %1797 = vmatprep.subr.mxu0 0.0
    %1798 = vmatpush1.msra.mxu0 0.0
    %1799 = vmatprep.subr.mxu0 0.0
    %1800 = vmatpush1.msra.mxu0 0.0
    %1801 = vmatprep.subr.mxu0 0.0
    %1802 = vmatpush1.msra.mxu0 0.0
    %1803 = vmatprep.subr.mxu0 0.0
    %1804 = vmatpush1.msra.mxu0 0.0
    %1805 = vmatprep.subr.mxu0 0.0
    %1806 = vmatpush1.msra.mxu0 0.0
    %1807 = vmatprep.subr.mxu0 0.0
    %1808 = vmatpush1.msra.mxu0 0.0
    %1809 = vmatprep.subr.mxu0 0.0
    %1810 = vmatpush1.msra.mxu0 0.0
    %1811 = vmatprep.subr.mxu0 0.0
    %1812 = vmatpush1.msra.mxu0 0.0
    %1813 = vmatprep.subr.mxu0 0.0
    %1814 = vmatpush1.msra.mxu0 0.0
    %1815 = vmatprep.subr.mxu0 0.0
    %1816 = vmatpush1.msra.mxu0 0.0
    %1817 = vmatprep.subr.mxu0 0.0
    %1818 = vmatpush1.msra.mxu0 0.0
    %1819 = vmatprep.subr.mxu0 0.0
    %1820 = vmatpush1.msra.mxu0 0.0
    %1821 = vmatprep.subr.mxu0 0.0
    %1822 = vmatpush1.msra.mxu0 0.0
    %1823 = vmatprep.mubr.f32.mxu0 0.0
    %1824 = vmatmul.mubr.f32.gmra.mrb[0].mxu0 %v1757
    %v1825 = vpop.f32.mrb[0].mxu0
    %v1826 = vadd.f32 0.0, %v1825
    %v1827 = vpop.f32.mrb[0].mxu0
    %1828 = vdwg.mxu0
    %1829 = vst.msk [vmem:[#allocation3 + $0x8] sm:$0xff] %vm135, %v1826
    %v1830 = vld [vmem:[#allocation3] sm:$0xff]
    %v1831 = vld [vmem:[#allocation3 + $0x8] sm:$0xff]
    %v1832 = vadd.f32 %v122, %v1830
    %v1833 = vadd.f32 %v123, %v1831
    %v1834 = vsel %vm135, %v1832, 0.0
    %1835 = vadd.xlane.f32.xlu0 %v1834
    %v1836 = vpop.xlane.xlu0 %1835
    %v1837 = vsel %vm135, %v1833, 0.0
    %1838 = vadd.xlane.f32.xlu0 %v1837
    %v1839 = vpop.xlane.xlu0 %1838
    %v1840 = vrcp.pop 32.0
    %v1841 = vmul.f32 %v1836, %v1840
    %v1842 = vmul.f32 %v1839, %v1840
    %v1843 = vsub.f32 %v1832, %v1841
    %v1844 = vsub.f32 %v1833, %v1842
    %v1845 = vmul.f32 %v1843, %v1843
    %v1846 = vmul.f32 %v1844, %v1844
    %v1847 = vsel %vm135, %v1845, 0.0
    %1848 = vadd.xlane.f32.xlu0 %v1847
    %v1849 = vpop.xlane.xlu0 %1848
    %v1850 = vsel %vm135, %v1846, 0.0
    %1851 = vadd.xlane.f32.xlu0 %v1850
    %v1852 = vpop.xlane.xlu0 %1851
    %v1853 = vmul.f32 %v1849, %v1840
    %v1854 = vmul.f32 %v1852, %v1840
    %v1855 = vadd.f32 %v1853, 1e-05
    %v1856 = vadd.f32 %v1854, 1e-05
    %v1857 = vrsqrt.pop %v1855
    %v1858 = vrsqrt.pop %v1856
    %v1859 = vmul.f32 %v1843, %v1857
    %v1860 = vmul.f32 %v1844, %v1858
    %v1861 = vlaneseq
    %v1862 = vshrl.u32 %v1861, 7
    %v1863 = vsub.s32 0, %v1862
    %v1864 = vrot.slane %v118, %v1863
    %v1865 = vmul.f32 %v1859, %v1864
    %v1866 = vmul.f32 %v1860, %v1864
    %v1867 = vlaneseq
    %v1868 = vshrl.u32 %v1867, 7
    %v1869 = vsub.s32 0, %v1868
    %v1870 = vrot.slane %v119, %v1869
    %v1871 = vadd.f32 %v1865, %v1870
    %v1872 = vadd.f32 %v1866, %v1870
    %v1873 = vld [vmem:[#allocation12] sm:$0xff]
    %v1874 = vld [vmem:[#allocation12 + $0x8] sm:$0xff]
    %v1875 = vld [vmem:[#allocation12 + $0x10] sm:$0xff]
    %v1876 = vld [vmem:[#allocation12 + $0x18] sm:$0xff]
    %v1877 = vlaneseq
    %v1878 = vshrl.u32 %v1877, 7
    %v1879 = vsub.s32 0, %v1878
    %v1880 = vrot.slane %v116, %v1879
    %v1882 = vsel %vm135, %v1871, 0
    %v1885 = vsel %vm135, %v1872, 0
    %1887 = vmatprep.subr.mxu0 0.0
    %1888 = vmatpush1.msra.mxu0 %v1873
    %1889 = vmatprep.subr.mxu0 0.0
    %1890 = vmatpush1.msra.mxu0 %v1874
    %1891 = vmatprep.subr.mxu0 0.0
    %1892 = vmatpush1.msra.mxu0 %v1875
    %1893 = vmatprep.subr.mxu0 0.0
    %1894 = vmatpush1.msra.mxu0 %v1876
    %1895 = vmatprep.subr.mxu0 0.0
    %1896 = vmatpush1.msra.mxu0 0.0
    %1897 = vmatprep.subr.mxu0 0.0
    %1898 = vmatpush1.msra.mxu0 0.0
    %1899 = vmatprep.subr.mxu0 0.0
    %1900 = vmatpush1.msra.mxu0 0.0
    %1901 = vmatprep.subr.mxu0 0.0
    %1902 = vmatpush1.msra.mxu0 0.0
    %1903 = vmatprep.subr.mxu0 0.0
    %1904 = vmatpush1.msra.mxu0 0.0
    %1905 = vmatprep.subr.mxu0 0.0
    %1906 = vmatpush1.msra.mxu0 0.0
    %1907 = vmatprep.subr.mxu0 0.0
    %1908 = vmatpush1.msra.mxu0 0.0
    %1909 = vmatprep.subr.mxu0 0.0
    %1910 = vmatpush1.msra.mxu0 0.0
    %1911 = vmatprep.subr.mxu0 0.0
    %1912 = vmatpush1.msra.mxu0 0.0
    %1913 = vmatprep.subr.mxu0 0.0
    %1914 = vmatpush1.msra.mxu0 0.0
    %1915 = vmatprep.subr.mxu0 0.0
    %1916 = vmatpush1.msra.mxu0 0.0
    %1917 = vmatprep.subr.mxu0 0.0
    %1918 = vmatpush1.msra.mxu0 0.0
    %1919 = vmatprep.subr.mxu0 0.0
    %1920 = vmatpush1.msra.mxu0 0.0
    %1921 = vmatprep.subr.mxu0 0.0
    %1922 = vmatpush1.msra.mxu0 0.0
    %1923 = vmatprep.subr.mxu0 0.0
    %1924 = vmatpush1.msra.mxu0 0.0
    %1925 = vmatprep.subr.mxu0 0.0
    %1926 = vmatpush1.msra.mxu0 0.0
    %1927 = vmatprep.subr.mxu0 0.0
    %1928 = vmatpush1.msra.mxu0 0.0
    %1929 = vmatprep.subr.mxu0 0.0
    %1930 = vmatpush1.msra.mxu0 0.0
    %1931 = vmatprep.subr.mxu0 0.0
    %1932 = vmatpush1.msra.mxu0 0.0
    %1933 = vmatprep.subr.mxu0 0.0
    %1934 = vmatpush1.msra.mxu0 0.0
    %1935 = vmatprep.subr.mxu0 0.0
    %1936 = vmatpush1.msra.mxu0 0.0
    %1937 = vmatprep.subr.mxu0 0.0
    %1938 = vmatpush1.msra.mxu0 0.0
    %1939 = vmatprep.subr.mxu0 0.0
    %1940 = vmatpush1.msra.mxu0 0.0
    %1941 = vmatprep.subr.mxu0 0.0
    %1942 = vmatpush1.msra.mxu0 0.0
    %1943 = vmatprep.subr.mxu0 0.0
    %1944 = vmatpush1.msra.mxu0 0.0
    %1945 = vmatprep.subr.mxu0 0.0
    %1946 = vmatpush1.msra.mxu0 0.0
    %1947 = vmatprep.subr.mxu0 0.0
    %1948 = vmatpush1.msra.mxu0 0.0
    %1949 = vmatprep.subr.mxu0 0.0
    %1950 = vmatpush1.msra.mxu0 0.0
    %1951 = vmatprep.mubr.f32.mxu0 0.0
    %1952 = vmatmul.mubr.f32.gmra.mrb[0].mxu0 %v1882
    %v1953 = vpop.f32.mrb[0].mxu0
    %v1954 = vadd.f32 %v1880, %v1953
    %v1955 = vpop.f32.mrb[0].mxu0
    %1956 = vmatprep.mubr.f32.mxu0 0.0
    %1957 = vmatmul.mubr.f32.gmra.mrb[0].mxu0 %v1885
    %v1958 = vpop.f32.mrb[0].mxu0
    %v1959 = vadd.f32 %v1880, %v1958
    %v1960 = vpop.f32.mrb[0].mxu0
    %1961 = vdwg.mxu0
    %v1962 = vmul.f32 %v1954, 0.5
    %v1963 = vmul.f32 %v1959, 0.5
    %v1964 = vmul.f32 %v1954, 0.70710677
    %v1965 = vmul.f32 %v1959, 0.70710677
    %vm1966 = vcmp.ge.f32.partialorder %v1964, 0.0
    %vm1967 = vcmp.ge.f32.partialorder %v1965, 0.0
    %v1968 = vsel %vm1966, 1.0, -1.0
    %v1969 = vsel %vm1967, 1.0, -1.0
    %v1970 = vand.u32 2147483647, %v1964
    %v1971 = vand.u32 2147483647, %v1965
    %v1972 = vmul.f32 %v1970, 0.3275911
    %v1973 = vmul.f32 %v1971, 0.3275911
    %v1974 = vadd.f32 %v1972, 1.0
    %v1975 = vadd.f32 %v1973, 1.0
    %v1976 = vrcp.pop %v1974
    %v1977 = vmul.f32 1.0, %v1976
    %v1978 = vrcp.pop %v1975
    %v1979 = vmul.f32 1.0, %v1978
    %v1980 = vmul.f32 %v1977, 1.0614054
    %v1981 = vmul.f32 %v1979, 1.0614054
    %v1982 = vadd.f32 %v1980, -1.4531521
    %v1983 = vadd.f32 %v1981, -1.4531521
    %v1984 = vmul.f32 %v1982, %v1977
    %v1985 = vmul.f32 %v1983, %v1979
    %v1986 = vadd.f32 %v1984, 1.4214138
    %v1987 = vadd.f32 %v1985, 1.4214138
    %v1988 = vmul.f32 %v1986, %v1977
    %v1989 = vmul.f32 %v1987, %v1979
    %v1990 = vadd.f32 %v1988, -0.28449672
    %v1991 = vadd.f32 %v1989, -0.28449672
    %v1992 = vmul.f32 %v1990, %v1977
    %v1993 = vmul.f32 %v1991, %v1979
    %v1994 = vadd.f32 %v1992, 0.2548296
    %v1995 = vadd.f32 %v1993, 0.2548296
    %v1996 = vmul.f32 %v1994, %v1977
    %v1997 = vmul.f32 %v1995, %v1979
    %v1998 = vsub.f32 0.0, %v1970
    %v1999 = vsub.f32 0.0, %v1971
    %v2000 = vmul.f32 %v1998, %v1970
    %v2001 = vmul.f32 %v1999, %v1971
    %v2002 = vmul.f32 %v2000, 1.442695
    %v2003 = vpow.pop %v2002
    %v2004 = vmul.f32 %v2001, 1.442695
    %v2005 = vpow.pop %v2004
    %v2006 = vmul.f32 %v1996, %v2003
    %v2007 = vmul.f32 %v1997, %v2005
    %v2008 = vsub.f32 1.0, %v2006
    %v2009 = vsub.f32 1.0, %v2007
    %v2010 = vmul.f32 %v1968, %v2008
    %v2011 = vmul.f32 %v1969, %v2009
    %v2012 = vadd.f32 %v2010, 1.0
    %v2013 = vadd.f32 %v2011, 1.0
    %v2014 = vmul.f32 %v1962, %v2012
    %v2015 = vmul.f32 %v1963, %v2013
    %v2016 = vld [vmem:[#allocation13] sm:$0xff]
    %v2017 = vld [vmem:[#allocation13 + $0x8] sm:$0xff]
    %v2018 = vld [vmem:[#allocation13 + $0x10] sm:$0xff]
    %v2019 = vld [vmem:[#allocation13 + $0x18] sm:$0xff]
    %v2020 = vlaneseq
    %v2021 = vshrl.u32 %v2020, 7
    %v2022 = vsub.s32 0, %v2021
    %v2023 = vrot.slane %v117, %v2022
    %v2025 = vsel %vm135, %v2014, 0
    %v2028 = vsel %vm135, %v2015, 0
    %2030 = vmatprep.subr.mxu0 0.0
    %2031 = vmatpush1.msra.mxu0 %v2016
    %2032 = vmatprep.subr.mxu0 0.0
    %2033 = vmatpush1.msra.mxu0 %v2017
    %2034 = vmatprep.subr.mxu0 0.0
    %2035 = vmatpush1.msra.mxu0 %v2018
    %2036 = vmatprep.subr.mxu0 0.0
    %2037 = vmatpush1.msra.mxu0 %v2019
    %2038 = vmatprep.subr.mxu0 0.0
    %2039 = vmatpush1.msra.mxu0 0.0
    %2040 = vmatprep.subr.mxu0 0.0
    %2041 = vmatpush1.msra.mxu0 0.0
    %2042 = vmatprep.subr.mxu0 0.0
    %2043 = vmatpush1.msra.mxu0 0.0
    %2044 = vmatprep.subr.mxu0 0.0
    %2045 = vmatpush1.msra.mxu0 0.0
    %2046 = vmatprep.subr.mxu0 0.0
    %2047 = vmatpush1.msra.mxu0 0.0
    %2048 = vmatprep.subr.mxu0 0.0
    %2049 = vmatpush1.msra.mxu0 0.0
    %2050 = vmatprep.subr.mxu0 0.0
    %2051 = vmatpush1.msra.mxu0 0.0
    %2052 = vmatprep.subr.mxu0 0.0
    %2053 = vmatpush1.msra.mxu0 0.0
    %2054 = vmatprep.subr.mxu0 0.0
    %2055 = vmatpush1.msra.mxu0 0.0
    %2056 = vmatprep.subr.mxu0 0.0
    %2057 = vmatpush1.msra.mxu0 0.0
    %2058 = vmatprep.subr.mxu0 0.0
    %2059 = vmatpush1.msra.mxu0 0.0
    %2060 = vmatprep.subr.mxu0 0.0
    %2061 = vmatpush1.msra.mxu0 0.0
    %2062 = vmatprep.subr.mxu0 0.0
    %2063 = vmatpush1.msra.mxu0 0.0
    %2064 = vmatprep.subr.mxu0 0.0
    %2065 = vmatpush1.msra.mxu0 0.0
    %2066 = vmatprep.subr.mxu0 0.0
    %2067 = vmatpush1.msra.mxu0 0.0
    %2068 = vmatprep.subr.mxu0 0.0
    %2069 = vmatpush1.msra.mxu0 0.0
    %2070 = vmatprep.subr.mxu0 0.0
    %2071 = vmatpush1.msra.mxu0 0.0
    %2072 = vmatprep.subr.mxu0 0.0
    %2073 = vmatpush1.msra.mxu0 0.0
    %2074 = vmatprep.subr.mxu0 0.0
    %2075 = vmatpush1.msra.mxu0 0.0
    %2076 = vmatprep.subr.mxu0 0.0
    %2077 = vmatpush1.msra.mxu0 0.0
    %2078 = vmatprep.subr.mxu0 0.0
    %2079 = vmatpush1.msra.mxu0 0.0
    %2080 = vmatprep.subr.mxu0 0.0
    %2081 = vmatpush1.msra.mxu0 0.0
    %2082 = vmatprep.subr.mxu0 0.0
    %2083 = vmatpush1.msra.mxu0 0.0
    %2084 = vmatprep.subr.mxu0 0.0
    %2085 = vmatpush1.msra.mxu0 0.0
    %2086 = vmatprep.subr.mxu0 0.0
    %2087 = vmatpush1.msra.mxu0 0.0
    %2088 = vmatprep.subr.mxu0 0.0
    %2089 = vmatpush1.msra.mxu0 0.0
    %2090 = vmatprep.subr.mxu0 0.0
    %2091 = vmatpush1.msra.mxu0 0.0
    %2092 = vmatprep.subr.mxu0 0.0
    %2093 = vmatpush1.msra.mxu0 0.0
    %2094 = vmatprep.mubr.f32.mxu0 0.0
    %2095 = vmatmul.mubr.f32.gmra.mrb[0].mxu0 %v2025
    %v2096 = vpop.f32.mrb[0].mxu0
    %v2097 = vadd.f32 %v2023, %v2096
    %v2098 = vpop.f32.mrb[0].mxu0
    %2099 = vmatprep.mubr.f32.mxu0 0.0
    %2100 = vmatmul.mubr.f32.gmra.mrb[0].mxu0 %v2028
    %v2101 = vpop.f32.mrb[0].mxu0
    %v2102 = vadd.f32 %v2023, %v2101
    %v2103 = vpop.f32.mrb[0].mxu0
    %2104 = vdwg.mxu0
    %v2105 = vadd.f32 %v1871, %v2097
    %v2106 = vadd.f32 %v1872, %v2102
    %v2107 = vsel %vm135, %v2105, 0.0
    %2108 = vadd.xlane.f32.xlu0 %v2107
    %v2109 = vpop.xlane.xlu0 %2108
    %v2110 = vsel %vm135, %v2106, 0.0
    %2111 = vadd.xlane.f32.xlu0 %v2110
    %v2112 = vpop.xlane.xlu0 %2111
    %v2113 = vmul.f32 %v2109, %v1840
    %v2114 = vmul.f32 %v2112, %v1840
    %v2115 = vsub.f32 %v2105, %v2113
    %v2116 = vsub.f32 %v2106, %v2114
    %v2117 = vmul.f32 %v2115, %v2115
    %v2118 = vmul.f32 %v2116, %v2116
    %v2119 = vsel %vm135, %v2117, 0.0
    %2120 = vadd.xlane.f32.xlu0 %v2119
    %v2121 = vpop.xlane.xlu0 %2120
    %v2122 = vsel %vm135, %v2118, 0.0
    %2123 = vadd.xlane.f32.xlu0 %v2122
    %v2124 = vpop.xlane.xlu0 %2123
    %v2125 = vmul.f32 %v2121, %v1840
    %v2126 = vmul.f32 %v2124, %v1840
    %v2127 = vadd.f32 %v2125, 1e-05
    %v2128 = vadd.f32 %v2126, 1e-05
    %v2129 = vrsqrt.pop %v2127
    %v2130 = vrsqrt.pop %v2128
    %v2131 = vmul.f32 %v2115, %v2129
    %v2132 = vmul.f32 %v2116, %v2130
    %v2133 = vlaneseq
    %v2134 = vshrl.u32 %v2133, 7
    %v2135 = vsub.s32 0, %v2134
    %v2136 = vrot.slane %v120, %v2135
    %v2137 = vmul.f32 %v2131, %v2136
    %v2138 = vmul.f32 %v2132, %v2136
    %v2139 = vlaneseq
    %v2140 = vshrl.u32 %v2139, 7
    %v2141 = vsub.s32 0, %v2140
    %v2142 = vrot.slane %v121, %v2141
    %v2143 = vadd.f32 %v2137, %v2142
    %v2144 = vadd.f32 %v2138, %v2142
    %2145 = vst.msk [vmem:[#allocation15] sm:$0xff] %vm135, %v2143
    %2146 = vst.msk [vmem:[#allocation15 + $0x8] sm:$0xff] %vm135, %v2144
    // Predicated region
    $region58: #{tpu_custom_call.1} parent=1 // pred_check
      _
    $region59: #{tpu_custom_call.1} parent=1 // pred_check_branch
      %2148 = sbr.rel (0) target = $region61
    $region60: #{tpu_custom_call.1} parent=1 // pred_region
      %s2150 = ssub.s32 256, 256
      %2151 = vsyncadd [#allocation6], %s2150
      %s2152 = sshll.u32 [#allocation15], 4
      %s2153 = int_to_ptr.vmem [resolvable:$true] %s2152
      %2158 = dma.vmem_to_hbm [thread:$0]  %s2153, 256, %s8, [#allocation6], 128, 128, 8
    $region61: #{tpu_custom_call.1} parent=1 // pred_fallthru
      _
    // Predicated region
    $region62: #{tpu_custom_call.1} parent=1 // pred_check
      _
    $region63: #{tpu_custom_call.1} parent=1 // pred_check_branch
      %2160 = sbr.rel (0) target = $region65
    $region64: #{tpu_custom_call.1} parent=1 // pred_region
      %s2162 = ssub.s32 256, 256
      %2163 = vsyncadd [#allocation17], %s2162
      %s2164 = sshll.u32 [#allocation16], 4
      %s2165 = int_to_ptr.vmem [resolvable:$true] %s2164
      %2170 = dma.vmem_to_hbm [thread:$0]  %s2165, 256, %s9, [#allocation17], 128, 128, 8
    $region65: #{tpu_custom_call.1} parent=1 // pred_fallthru
      _
    // Predicated region
    $region66: #{tpu_custom_call.1} parent=1 // pred_check
      _
    $region67: #{tpu_custom_call.1} parent=1 // pred_check_branch
      %2172 = sbr.rel (0) target = $region69
    $region68: #{tpu_custom_call.1} parent=1 // pred_region
      %2173 = dma.done [#allocation6], 256
    $region69: #{tpu_custom_call.1} parent=1 // pred_fallthru
      _
    // Predicated region
    $region70: #{tpu_custom_call.1} parent=1 // pred_check
      _
    $region71: #{tpu_custom_call.1} parent=1 // pred_check_branch
      %2175 = sbr.rel (0) target = $region73
    $region72: #{tpu_custom_call.1} parent=1 // pred_region
      %2176 = dma.done [#allocation17], 256
    $region73: #{tpu_custom_call.1} parent=1 // pred_fallthru
      _
    %2177 = vsyncpa [#allocation5], 1
    %2178 = vsyncpa [#allocation8], 1
    %2179 = vsyncpa [#allocation11], 1
    %2180 = vsyncpa [#allocation14], 1
    %2181 = vsyncpa [#allocation6], 1
    %2182 = vsyncpa [#allocation17], 1

</llo_original>
